<compile_context>
chip_gen: v6e
topology: v6e:2x2x1
jax: 0.10.0
libtpu: 0.0.40
codegen_flags: <defaults>
</compile_context>

<pallas_src>
import functools

import jax
import jax.numpy as jnp
from jax.experimental import pallas as pl
from jax.experimental.pallas import tpu as pltpu

FORCE_RATIO = 0.5
EPSILON = 0.01
_ACC_LANES = 128          # lane-dense accumulator width (one vreg lane dim)


def _freq_repulsion_kernel(cx_r_ref, cy_r_ref, cx_c_ref, cy_c_ref,
                           cx_t_ref, cy_t_ref, cmap_ref,
                           ex_ref, ey_ref, acc_ref, *,
                           thr_x2, thr_y2, epsilon):
    """One (row-tile, col-tile) block of the pairwise repulsion.

    Grid: i = row tile ("parallel"), k = column/reduction tile ("arbitrary",
    last). acc_ref is a lane-dense (tile_m, 128) f32 scratch accumulator:
      col 0 = sum_j W_ij, col 1 = sum_j W_ij * cx_j, col 2 = sum_j W_ij * cy_j.
    ex_ref / ey_ref are resident (tile_m, 1) outputs written only at the last
    k step. NOTE: pl.program_id / pl.num_programs are only called at kernel
    top level, never inside pl.when bodies.
    """
    k = pl.program_id(1)
    last_k = pl.num_programs(1) - 1

    @pl.when(k == 0)
    def _init():
        acc_ref[...] = jnp.zeros_like(acc_ref)

    # (TM, 1) - (1, TN) -> (TM, TN) pairwise center deltas
    dx = cx_r_ref[...] - cx_c_ref[...]
    dy = cy_r_ref[...] - cy_c_ref[...]
    dx2 = dx * dx
    dy2 = dy * dy

    # squared-threshold test reuses dx2/dy2 (no abs on the VALU slot)
    thr_mask = (dx2 < thr_x2) & (dy2 < thr_y2)
    inv = 1.0 / (dx2 + dy2 + epsilon)
    # collision map folded in multiplicatively (single select per element)
    w = jnp.where(thr_mask, inv, 0.0) * cmap_ref[...].astype(jnp.float32)

    # MXU offload of the three row reductions: W @ [1 | cx_col | cy_col | 0..]
    tile_n = w.shape[1]
    lane = jax.lax.broadcasted_iota(jnp.int32, (tile_n, _ACC_LANES), 1)
    m_mat = jnp.where(lane == 0, 1.0,
            jnp.where(lane == 1, cx_t_ref[...],
            jnp.where(lane == 2, cy_t_ref[...], 0.0)))
    acc_ref[...] += jnp.dot(w, m_mat,
                            preferred_element_type=jnp.float32,
                            precision=jax.lax.Precision.HIGHEST)

    @pl.when(k == last_k)
    def _finalize():
        acc = acc_ref[...]
        s = acc[:, 0:1]
        sx = acc[:, 1:2]
        sy = acc[:, 2:3]
        ex_ref[...] = cx_r_ref[...] * s - sx
        ey_ref[...] = cy_r_ref[...] * s - sy


def _pick_tiles(n, num_movable, tile_m, tile_n):
    tile_m = min(tile_m, n)
    tile_n = min(tile_n, n)
    assert n % tile_m == 0 and n % tile_n == 0, (
        "N must be a multiple of the tile sizes (pad inputs with zero "
        "collision rows/cols and FINITE positions if needed)")
    # keep >= 2 row tiles when possible so v7x's megacore ("parallel" row
    # axis) keeps both TensorCores busy
    while (-(-num_movable // tile_m) < 2 and tile_m % 16 == 0
           and n % (tile_m // 2) == 0):
        tile_m //= 2
    return tile_m, tile_n


@functools.partial(
    jax.jit,
    static_argnames=("num_movable", "thr_x", "thr_y", "tile_m", "tile_n"))
def _frequency_repulsion_jit(pos, node_size_x, node_size_y, cmap_i8, *,
                             num_movable, thr_x, thr_y, tile_m, tile_n):
    n = node_size_x.shape[0]
    num_row_tiles = -(-num_movable // tile_m)      # skip full filler row tiles
    m_pad = num_row_tiles * tile_m
    num_col_tiles = n // tile_n

    # O(N) glue (fused under jit): cell centers; the O(N^2) path is in-kernel
    cx = (pos[:n] + 0.5 * node_size_x).astype(jnp.float32)
    cy = (pos[n:] + 0.5 * node_size_y).astype(jnp.float32)
    cx_n1 = cx.reshape(n, 1)     # row-tile view AND column-major view for MXU
    cy_n1 = cy.reshape(n, 1)
    cx_1n = cx.reshape(1, n)
    cy_1n = cy.reshape(1, n)

    kernel = functools.partial(
        _freq_repulsion_kernel,
        thr_x2=float(thr_x) * float(thr_x),
        thr_y2=float(thr_y) * float(thr_y),
        epsilon=EPSILON)

    cost = pl.CostEstimate(
        flops=int(m_pad) * int(n) * (12 + 2 * _ACC_LANES),
        transcendentals=int(m_pad) * int(n),
        bytes_accessed=int(m_pad) * int(n) + 16 * int(n) + 8 * int(m_pad))

    ex2d, ey2d = pl.pallas_call(
        kernel,
        grid=(num_row_tiles, num_col_tiles),
        in_specs=[
            pl.BlockSpec((tile_m, 1), lambda i, k: (i, 0)),       # cx rows
            pl.BlockSpec((tile_m, 1), lambda i, k: (i, 0)),       # cy rows
            pl.BlockSpec((1, tile_n), lambda i, k: (0, k)),       # cx cols
            pl.BlockSpec((1, tile_n), lambda i, k: (0, k)),       # cy cols
            pl.BlockSpec((tile_n, 1), lambda i, k: (k, 0)),       # cx cols (col-major, for MXU M)
            pl.BlockSpec((tile_n, 1), lambda i, k: (k, 0)),       # cy cols (col-major, for MXU M)
            pl.BlockSpec((tile_m, tile_n), lambda i, k: (i, k)),  # cmap (int8)
        ],
        out_specs=[
            pl.BlockSpec((tile_m, 1), lambda i, k: (i, 0)),       # energy_x
            pl.BlockSpec((tile_m, 1), lambda i, k: (i, 0)),       # energy_y
        ],
        out_shape=[
            jax.ShapeDtypeStruct((m_pad, 1), jnp.float32),
            jax.ShapeDtypeStruct((m_pad, 1), jnp.float32),
        ],
        scratch_shapes=[pltpu.VMEM((tile_m, _ACC_LANES), jnp.float32)],
        compiler_params=pltpu.CompilerParams(
            dimension_semantics=("parallel", "arbitrary"),
            vmem_limit_bytes=48 * 1024 * 1024),
        cost_estimate=cost,
    )(cx_n1, cy_n1, cx_1n, cy_1n, cx_n1, cy_n1, cmap_i8)

    # O(N) finalize (fused under jit): only movable nodes receive energy;
    # force_ratio folded into the same mask. Filler/fixed tail is zero.
    scale = jnp.where(jnp.arange(m_pad) < num_movable,
                      jnp.float32(FORCE_RATIO), jnp.float32(0.0))
    energy_x = jnp.pad(ex2d[:, 0] * scale, (0, n - m_pad))
    energy_y = jnp.pad(ey2d[:, 0] * scale, (0, n - m_pad))
    energy = jnp.concatenate([energy_x, energy_y])   # same layout as `pos`
    abs_sum_energy = jnp.sum(jnp.abs(energy))
    return abs_sum_energy, energy


def frequency_repulsion_forward(pos, node_size_x, node_size_y,
                                potential_collision_map,
                                num_movable_nodes, num_filler_nodes,
                                qubit_dist_threhold_x, qubit_dist_threhold_y,
                                coupler_dist_threhold_x=None,
                                coupler_dist_threhold_y=None,
                                tile_m=256, tile_n=2048):
    del num_filler_nodes, coupler_dist_threhold_x, coupler_dist_threhold_y
    n = node_size_x.shape[0]
    assert pos.shape == (2 * n,)
    num_movable = int(num_movable_nodes)
    assert 0 < num_movable <= n
    tile_m, tile_n = _pick_tiles(n, num_movable, tile_m, tile_n)

    cmap_i8 = potential_collision_map
    if cmap_i8.dtype != jnp.int8:
        # Callers should cache this cast (FrequencyRepulsion.__init__ does);
        # done here only for direct functional use.
        cmap_i8 = (potential_collision_map != 0).astype(jnp.int8)

    return _frequency_repulsion_jit(
        pos, jnp.asarray(node_size_x, jnp.float32),
        jnp.asarray(node_size_y, jnp.float32), cmap_i8,
        num_movable=num_movable,
        thr_x=float(qubit_dist_threhold_x),
        thr_y=float(qubit_dist_threhold_y),
        tile_m=tile_m, tile_n=tile_n)


class FrequencyRepulsion:
    """JAX/Pallas port of qplacer FrequencyRepulsion (forward only)."""

    def __init__(self, node_size_x, node_size_y, num_movable_nodes,
                 num_filler_nodes, potential_collision_map,
                 qubit_dist_threhold_x, qubit_dist_threhold_y,
                 coupler_dist_threhold_x=None, coupler_dist_threhold_y=None,
                 placedb=None):
        self.node_size_x = jnp.asarray(node_size_x, jnp.float32)
        self.node_size_y = jnp.asarray(node_size_y, jnp.float32)
        self.num_movable_nodes = int(num_movable_nodes)
        self.num_filler_nodes = int(num_filler_nodes)
        # cache the int8 collision map ONCE (a per-call f32 -> int8 recast of
        # the O(N^2) map would roughly double HBM traffic of every forward)
        self.cmap_i8 = (jnp.asarray(potential_collision_map) != 0).astype(jnp.int8)
        self.qubit_dist_threhold_x = float(qubit_dist_threhold_x)
        self.qubit_dist_threhold_y = float(qubit_dist_threhold_y)
        # TODO(synk): coupler_dist_threhold_* are accepted but unused, matching
        # the reference forward which only passes the qubit thresholds.
        self.coupler_dist_threhold_x = coupler_dist_threhold_x
        self.coupler_dist_threhold_y = coupler_dist_threhold_y

    def __call__(self, pos, tile_m=256, tile_n=2048):
        n = self.node_size_x.shape[0]
        tile_m, tile_n = _pick_tiles(n, self.num_movable_nodes, tile_m, tile_n)
        abs_sum_energy, _ = _frequency_repulsion_jit(
            pos, self.node_size_x, self.node_size_y, self.cmap_i8,
            num_movable=self.num_movable_nodes,
            thr_x=self.qubit_dist_threhold_x,
            thr_y=self.qubit_dist_threhold_y,
            tile_m=tile_m, tile_n=tile_n)
        return abs_sum_energy

    forward = __call__


def _reference(pos, sx, sy, cmap, num_movable, thr_x, thr_y):
    n = sx.shape[0]
    cx = pos[:n] + 0.5 * sx
    cy = pos[n:] + 0.5 * sy
    dx = cx[:, None] - cx[None, :]
    dy = cy[:, None] - cy[None, :]
    within = (jnp.abs(dx) < thr_x) & (jnp.abs(dy) < thr_y) & (cmap > 0)
    inv = FORCE_RATIO / (dx * dx + dy * dy + EPSILON)
    ex = jnp.sum(jnp.where(within, dx * inv, 0.0), axis=1)
    ey = jnp.sum(jnp.where(within, dy * inv, 0.0), axis=1)
    mov = (jnp.arange(n) < num_movable).astype(jnp.float32)
    ex = ex * mov
    ey = ey * mov
    return jnp.sum(jnp.abs(ex)) + jnp.sum(jnp.abs(ey))


if __name__ == "__main__":
    key = jax.random.PRNGKey(0)
    N = 256                   # total nodes (movable + filler)
    NUM_MOVABLE = 192
    NUM_FILLER = N - NUM_MOVABLE
    THR_X = 2.0
    THR_Y = 2.0

    k1, k2, k3, k4 = jax.random.split(key, 4)
    pos = jax.random.uniform(k1, (2 * N,), jnp.float32, 0.0, 20.0)
    node_size_x = jax.random.uniform(k2, (N,), jnp.float32, 0.5, 1.5)
    node_size_y = jax.random.uniform(k3, (N,), jnp.float32, 0.5, 1.5)

    # deterministic sparse symmetric 0/1 collision map, zero diagonal
    raw = jax.random.uniform(k4, (N, N), jnp.float32)
    cmap = (raw < 0.05).astype(jnp.float32)
    cmap = jnp.maximum(cmap, cmap.T)
    cmap = cmap * (1.0 - jnp.eye(N, dtype=jnp.float32))

    op = FrequencyRepulsion(
        node_size_x=node_size_x, node_size_y=node_size_y,
        num_movable_nodes=NUM_MOVABLE, num_filler_nodes=NUM_FILLER,
        potential_collision_map=cmap,
        qubit_dist_threhold_x=THR_X, qubit_dist_threhold_y=THR_Y)

    # tile_n=128 at this small N exercises the multi-column-tile reduction
    # path; default tile_m=256 gets auto-halved to 128 (>= 2 row tiles).
    abs_sum_energy = op(pos, tile_n=128)
    abs_sum_energy = jax.block_until_ready(abs_sum_energy)

    ref = _reference(pos, node_size_x, node_size_y, cmap,
                     NUM_MOVABLE, THR_X, THR_Y)
    assert jnp.allclose(abs_sum_energy, ref, rtol=5e-3, atol=1e-2), \
        (abs_sum_energy, ref)

    print("KERNEL_OK")
</pallas_src>

<mosaic_0001>
module attributes {stable_mosaic.version = 11 : i64} {
  func.func @_freq_repulsion_kernel(%arg0: i32, %arg1: i32, %arg2: memref<128x1xf32, #tpu.memory_space<vmem>>, %arg3: memref<128x1xf32, #tpu.memory_space<vmem>>, %arg4: memref<1x128xf32, #tpu.memory_space<vmem>>, %arg5: memref<1x128xf32, #tpu.memory_space<vmem>>, %arg6: memref<128x1xf32, #tpu.memory_space<vmem>>, %arg7: memref<128x1xf32, #tpu.memory_space<vmem>>, %arg8: memref<128x128xi8, #tpu.memory_space<vmem>>, %arg9: memref<128x1xf32, #tpu.memory_space<vmem>>, %arg10: memref<128x1xf32, #tpu.memory_space<vmem>>, %arg11: memref<128x128xf32, #tpu.memory_space<vmem>>) attributes {dimension_semantics = [#tpu.dimension_semantics<parallel>, #tpu.dimension_semantics<arbitrary>], iteration_bounds = array<i64: 2, 2>, scalar_prefetch = 0 : i64, scratch_operands = 1 : i64, tpu.core_type = #tpu.core_type<tc>, window_params = [{transform_indices = @transform_0, window_bounds = array<i64: 128, 1>}, {transform_indices = @transform_1, window_bounds = array<i64: 128, 1>}, {transform_indices = @transform_2, window_bounds = array<i64: 1, 128>}, {transform_indices = @transform_3, window_bounds = array<i64: 1, 128>}, {transform_indices = @transform_4, window_bounds = array<i64: 128, 1>}, {transform_indices = @transform_5, window_bounds = array<i64: 128, 1>}, {transform_indices = @transform_6, window_bounds = array<i64: 128, 128>}, {transform_indices = @transform_7, window_bounds = array<i64: 128, 1>}, {transform_indices = @transform_8, window_bounds = array<i64: 128, 1>}]} {
    %c0_i32 = arith.constant 0 : i32
    %0 = arith.cmpi eq, %arg1, %c0_i32 : i32
    %1 = arith.extui %0 : i1 to i32
    %c0_i32_0 = arith.constant 0 : i32
    %2 = arith.cmpi ne, %1, %c0_i32_0 : i32
    scf.if %2 {
      %cst_28 = arith.constant 0.000000e+00 : f32
      %55 = vector.broadcast %cst_28 : f32 to vector<128x128xf32>
      %c0_29 = arith.constant 0 : index
      %c0_30 = arith.constant 0 : index
      %56 = vector.load %arg11[%c0_29, %c0_30] : memref<128x128xf32, #tpu.memory_space<vmem>>, vector<128x128xf32>
      tpu.vector_store %arg11[%c0_29, %c0_30], %55 {strides = array<i32>} : memref<128x128xf32, #tpu.memory_space<vmem>>, vector<128x128xf32>,
    } else {
    }
    %c0 = arith.constant 0 : index
    %c0_1 = arith.constant 0 : index
    %3 = vector.load %arg2[%c0, %c0_1] : memref<128x1xf32, #tpu.memory_space<vmem>>, vector<128x1xf32>
    %c0_2 = arith.constant 0 : index
    %c0_3 = arith.constant 0 : index
    %4 = vector.load %arg4[%c0_2, %c0_3] : memref<1x128xf32, #tpu.memory_space<vmem>>, vector<1x128xf32>
    %5 = vector.broadcast %3 : vector<128x1xf32> to vector<128x128xf32>
    %6 = vector.broadcast %4 : vector<1x128xf32> to vector<128x128xf32>
    %7 = arith.subf %5, %6 : vector<128x128xf32>
    %c0_4 = arith.constant 0 : index
    %c0_5 = arith.constant 0 : index
    %8 = vector.load %arg3[%c0_4, %c0_5] : memref<128x1xf32, #tpu.memory_space<vmem>>, vector<128x1xf32>
    %c0_6 = arith.constant 0 : index
    %c0_7 = arith.constant 0 : index
    %9 = vector.load %arg5[%c0_6, %c0_7] : memref<1x128xf32, #tpu.memory_space<vmem>>, vector<1x128xf32>
    %10 = vector.broadcast %8 : vector<128x1xf32> to vector<128x128xf32>
    %11 = vector.broadcast %9 : vector<1x128xf32> to vector<128x128xf32>
    %12 = arith.subf %10, %11 : vector<128x128xf32>
    %13 = arith.mulf %7, %7 : vector<128x128xf32>
    %14 = arith.mulf %12, %12 : vector<128x128xf32>
    %cst = arith.constant 4.000000e+00 : f32
    %15 = vector.broadcast %cst : f32 to vector<128x128xf32>
    %16 = arith.cmpf olt, %13, %15 : vector<128x128xf32>
    %cst_8 = arith.constant 4.000000e+00 : f32
    %17 = vector.broadcast %cst_8 : f32 to vector<128x128xf32>
    %18 = arith.cmpf olt, %14, %17 : vector<128x128xf32>
    %19 = arith.andi %16, %18 : vector<128x128xi1>
    %20 = arith.addf %13, %14 : vector<128x128xf32>
    %cst_9 = arith.constant 0.00999999977 : f32
    %21 = vector.broadcast %cst_9 : f32 to vector<128x128xf32>
    %22 = arith.addf %20, %21 : vector<128x128xf32>
    %cst_10 = arith.constant 1.000000e+00 : f32
    %23 = vector.broadcast %cst_10 : f32 to vector<128x128xf32>
    %24 = arith.divf %23, %22 : vector<128x128xf32>
    %cst_11 = arith.constant 0.000000e+00 : f32
    %25 = vector.broadcast %cst_11 : f32 to vector<128x128xf32>
    %26 = arith.select %19, %24, %25 : vector<128x128xi1>, vector<128x128xf32>
    %c0_12 = arith.constant 0 : index
    %c0_13 = arith.constant 0 : index
    %27 = vector.load %arg8[%c0_12, %c0_13] : memref<128x128xi8, #tpu.memory_space<vmem>>, vector<128x128xi8>
    %28 = arith.sitofp %27 : vector<128x128xi8> to vector<128x128xf32>
    %29 = arith.mulf %26, %28 : vector<128x128xf32>
    %30 = tpu.iota {dimensions = array<i32: 1>} : vector<128x128xi32>
    %c0_i32_14 = arith.constant 0 : i32
    %31 = vector.broadcast %c0_i32_14 : i32 to vector<128x128xi32>
    %32 = arith.cmpi eq, %30, %31 : vector<128x128xi32>
    %c1_i32 = arith.constant 1 : i32
    %33 = vector.broadcast %c1_i32 : i32 to vector<128x128xi32>
    %34 = arith.cmpi eq, %30, %33 : vector<128x128xi32>
    %c0_15 = arith.constant 0 : index
    %c0_16 = arith.constant 0 : index
    %35 = vector.load %arg6[%c0_15, %c0_16] : memref<128x1xf32, #tpu.memory_space<vmem>>, vector<128x1xf32>
    %c2_i32 = arith.constant 2 : i32
    %36 = vector.broadcast %c2_i32 : i32 to vector<128x128xi32>
    %37 = arith.cmpi eq, %30, %36 : vector<128x128xi32>
    %c0_17 = arith.constant 0 : index
    %c0_18 = arith.constant 0 : index
    %38 = vector.load %arg7[%c0_17, %c0_18] : memref<128x1xf32, #tpu.memory_space<vmem>>, vector<128x1xf32>
    %cst_19 = arith.constant 0.000000e+00 : f32
    %39 = vector.shape_cast %38 : vector<128x1xf32> to vector<128x1xf32>
    %40 = vector.broadcast %39 : vector<128x1xf32> to vector<128x128xf32>
    %41 = vector.broadcast %cst_19 : f32 to vector<128x128xf32>
    %42 = arith.select %37, %40, %41 : vector<128x128xi1>, vector<128x128xf32>
    %43 = vector.shape_cast %35 : vector<128x1xf32> to vector<128x1xf32>
    %44 = vector.broadcast %43 : vector<128x1xf32> to vector<128x128xf32>
    %45 = arith.select %34, %44, %42 : vector<128x128xi1>, vector<128x128xf32>
    %cst_20 = arith.constant 1.000000e+00 : f32
    %46 = vector.broadcast %cst_20 : f32 to vector<128x128xf32>
    %47 = arith.select %32, %46, %45 : vector<128x128xi1>, vector<128x128xf32>
    %c0_21 = arith.constant 0 : index
    %c0_22 = arith.constant 0 : index
    %48 = vector.load %arg11[%c0_21, %c0_22] : memref<128x128xf32, #tpu.memory_space<vmem>>, vector<128x128xf32>
    %cst_23 = arith.constant dense<0.000000e+00> : vector<128x128xf32>
    %49 = tpu.matmul %29, %47, %cst_23 {dimension_numbers = #tpu.dot_dimension_numbers<[1], [0], [0], [1], [0, 0, 1, 1], [], []>, precision = #tpu.contract_precision<fp32>} : vector<128x128xf32>, vector<128x128xf32>, vector<128x128xf32> -> vector<128x128xf32>
    %50 = arith.addf %48, %49 : vector<128x128xf32>
    %c0_24 = arith.constant 0 : index
    %c0_25 = arith.constant 0 : index
    %51 = vector.load %arg11[%c0_24, %c0_25] : memref<128x128xf32, #tpu.memory_space<vmem>>, vector<128x128xf32>
    tpu.vector_store %arg11[%c0_24, %c0_25], %50 {strides = array<i32>} : memref<128x128xf32, #tpu.memory_space<vmem>>, vector<128x128xf32>,
    %c1_i32_26 = arith.constant 1 : i32
    %52 = arith.cmpi eq, %arg1, %c1_i32_26 : i32
    %53 = arith.extui %52 : i1 to i32
    %c0_i32_27 = arith.constant 0 : i32
    %54 = arith.cmpi ne, %53, %c0_i32_27 : i32
    scf.if %54 {
      %c0_28 = arith.constant 0 : index
      %c0_29 = arith.constant 0 : index
      %55 = vector.load %arg11[%c0_28, %c0_29] : memref<128x128xf32, #tpu.memory_space<vmem>>, vector<128x128xf32>
      %56 = vector.extract_strided_slice %55 {offsets = [0, 0], sizes = [128, 1], strides = [1, 1]} : vector<128x128xf32> to vector<128x1xf32>
      %57 = vector.extract_strided_slice %55 {offsets = [0, 1], sizes = [128, 1], strides = [1, 1]} : vector<128x128xf32> to vector<128x1xf32>
      %58 = vector.extract_strided_slice %55 {offsets = [0, 2], sizes = [128, 1], strides = [1, 1]} : vector<128x128xf32> to vector<128x1xf32>
      %c0_30 = arith.constant 0 : index
      %c0_31 = arith.constant 0 : index
      %59 = vector.load %arg2[%c0_30, %c0_31] : memref<128x1xf32, #tpu.memory_space<vmem>>, vector<128x1xf32>
      %60 = arith.mulf %59, %56 : vector<128x1xf32>
      %61 = arith.subf %60, %57 : vector<128x1xf32>
      %c0_32 = arith.constant 0 : index
      %c0_33 = arith.constant 0 : index
      %62 = vector.load %arg9[%c0_32, %c0_33] : memref<128x1xf32, #tpu.memory_space<vmem>>, vector<128x1xf32>
      tpu.vector_store %arg9[%c0_32, %c0_33], %61 {strides = array<i32>} : memref<128x1xf32, #tpu.memory_space<vmem>>, vector<128x1xf32>,
      %c0_34 = arith.constant 0 : index
      %c0_35 = arith.constant 0 : index
      %63 = vector.load %arg3[%c0_34, %c0_35] : memref<128x1xf32, #tpu.memory_space<vmem>>, vector<128x1xf32>
      %64 = arith.mulf %63, %56 : vector<128x1xf32>
      %65 = arith.subf %64, %58 : vector<128x1xf32>
      %c0_36 = arith.constant 0 : index
      %c0_37 = arith.constant 0 : index
      %66 = vector.load %arg10[%c0_36, %c0_37] : memref<128x1xf32, #tpu.memory_space<vmem>>, vector<128x1xf32>
      tpu.vector_store %arg10[%c0_36, %c0_37], %65 {strides = array<i32>} : memref<128x1xf32, #tpu.memory_space<vmem>>, vector<128x1xf32>,
    } else {
    }
    return
  }
  func.func @transform_0(%arg0: i32, %arg1: i32) -> (i32, i32) {
    %c0_i32 = arith.constant 0 : i32
    %c0_i32_0 = arith.constant 0 : i32
    return %arg0, %c0_i32 : i32, i32
  }
  func.func @transform_1(%arg0: i32, %arg1: i32) -> (i32, i32) {
    %c0_i32 = arith.constant 0 : i32
    %c0_i32_0 = arith.constant 0 : i32
    return %arg0, %c0_i32 : i32, i32
  }
  func.func @transform_2(%arg0: i32, %arg1: i32) -> (i32, i32) {
    %c0_i32 = arith.constant 0 : i32
    %c0_i32_0 = arith.constant 0 : i32
    return %c0_i32, %arg1 : i32, i32
  }
  func.func @transform_3(%arg0: i32, %arg1: i32) -> (i32, i32) {
    %c0_i32 = arith.constant 0 : i32
    %c0_i32_0 = arith.constant 0 : i32
    return %c0_i32, %arg1 : i32, i32
  }
  func.func @transform_4(%arg0: i32, %arg1: i32) -> (i32, i32) {
    %c0_i32 = arith.constant 0 : i32
    %c0_i32_0 = arith.constant 0 : i32
    return %arg1, %c0_i32 : i32, i32
  }
  func.func @transform_5(%arg0: i32, %arg1: i32) -> (i32, i32) {
    %c0_i32 = arith.constant 0 : i32
    %c0_i32_0 = arith.constant 0 : i32
    return %arg1, %c0_i32 : i32, i32
  }
  func.func @transform_6(%arg0: i32, %arg1: i32) -> (i32, i32) {
    %c0_i32 = arith.constant 0 : i32
    return %arg0, %arg1 : i32, i32
  }
  func.func @transform_7(%arg0: i32, %arg1: i32) -> (i32, i32) {
    %c0_i32 = arith.constant 0 : i32
    %c0_i32_0 = arith.constant 0 : i32
    return %arg0, %c0_i32 : i32, i32
  }
  func.func @transform_8(%arg0: i32, %arg1: i32) -> (i32, i32) {
    %c0_i32 = arith.constant 0 : i32
    %c0_i32_0 = arith.constant 0 : i32
    return %arg0, %c0_i32 : i32, i32
  }
}

</mosaic_0001>

<llo_original>
// kernel: _frequency_repulsion_jit.1
$region0: #{_frequency_repulsion_jit.1}
  #allocation0 [shape = 'u32[]', space=smem, size = 0x4, offset = 0x4, fixed_abs, tag = 'smem constant byte address 0x4 - core index']
  #allocation1 [shape = 'u32[144,128]{1,0:T(1,128)}', space=vmem, size = 0x12000, scoped, tag = 'internal scratch']
  #allocation2 [shape = 'f32[128,128]{1,0:T(8,128)}', space=vmem, size = 0x10000, scoped, tag = 'scratch operand']
  %s0 = inlined_call_operand.vmem [shape: f32[256,1], index: 0, kind: input, shape index: {}, may-alias: {0,4}]
  %s1 = inlined_call_operand.vmem [shape: f32[256,1], index: 1, kind: input, shape index: {}, may-alias: {1,5}]
  %s2 = inlined_call_operand.vmem [shape: f32[1,256], index: 2, kind: input, shape index: {}]
  %s3 = inlined_call_operand.vmem [shape: f32[1,256], index: 3, kind: input, shape index: {}]
  %s4 = inlined_call_operand.vmem [shape: f32[256,1], index: 4, kind: input, shape index: {}, may-alias: {0,4}]
  %s5 = inlined_call_operand.vmem [shape: f32[256,1], index: 5, kind: input, shape index: {}, may-alias: {1,5}]
  %s6 = inlined_call_operand.vmem [shape: s8[256,256], index: 6, kind: input, shape index: {}]
  %s7 = inlined_call_operand.vmem [shape: f32[256,1], index: 7, kind: output, shape index: {0}]
  %s8 = inlined_call_operand.vmem [shape: f32[256,1], index: 8, kind: output, shape index: {1}]
  %9 = xla_tuple %s7, %s8
  %s10 = sld [smem:[#allocation0]]
  $region115: #{_frequency_repulsion_jit.1} parent=0
    _
  %s12 = ssub.s32 1, %s10
  %s13 = scalar_select 0, %s12, %s10
  $region1: #{_frequency_repulsion_jit.1} parent=0
    #allocation3 [shape = 'u8[32768]{0}', space=vmem, size = 0x8000, scoped, tag = 'input window, operand 6']
    loop: start=0, step=1, limit=6
    $region2: #{_frequency_repulsion_jit.1} parent=1 // loop_pre_header
      _
    $region3: #{_frequency_repulsion_jit.1} parent=1 // loop_header
      %s15 = sphi 0, %s19
      %p16 = scmp.ge.s32.totalorder %s15, 6
      %s22 = sphi 0, %s34
      %s23 = sphi 0, %s30
      %s24 = sphi 0, %s22
      %s25 = sphi 0, %s23
      %s26 = sphi 0, %s24
      %s27 = sphi 0, %s25
      %s37 = sphi 0, %s39
      %s40 = sphi 0, %s37
      %s41 = sphi 0, %s40
      %s57 = sphi 0, %s41
      %s63 = sphi 0, %s65
      %s66 = sphi 0, %s63
      %s67 = sphi 0, %s66
      %s83 = sphi 0, %s67
      %s89 = sphi 0, %s91
      %s92 = sphi 0, %s89
      %s93 = sphi 0, %s92
      %s109 = sphi 0, %s93
      %s115 = sphi 0, %s117
      %s118 = sphi 0, %s115
      %s119 = sphi 0, %s118
      %s135 = sphi 0, %s119
      %s141 = sphi 0, %s143
      %s144 = sphi 0, %s141
      %s145 = sphi 0, %s144
      %s161 = sphi 0, %s145
      %s167 = sphi 0, %s169
      %s170 = sphi 0, %s167
      %s171 = sphi 0, %s170
      %s187 = sphi 0, %s171
      %s195 = sphi 0, %s197
      %s198 = sphi 0, %s195
      %s199 = sphi 0, %s198
      %s215 = sphi 0, %s199
      %s221 = sphi 0, %s223
      %s224 = sphi 0, %s221
      %s225 = sphi 0, %s224
      %s241 = sphi 0, %s225
      %s247 = sphi 0, %s249
      %s250 = sphi 0, %s247
      %s251 = sphi 0, %s250
      %s267 = sphi 0, %s251
    $region4: #{_frequency_repulsion_jit.1} parent=1 // loop_header_branch
      %18 = sbr.rel (%p16) target = $region8
    $region5: #{_frequency_repulsion_jit.1} parent=1 // loop_body
      %s20 = ssub.s32 %s15, 1
      %s21 = ssub.s32 %s15, 2
      %s28 = sadd.s32 1, %s23
      %p29 = scmp.ge.s32.totalorder %s28, 2
      %s30 = scalar_select %p29, 0, %s28
      %s31 = sadd.s32 1, %s22
      %s32 = scalar_select %p29, %s31, %s22
      %p33 = scmp.ge.s32.totalorder %s32, 2
      %s34 = scalar_select %p33, 0, %s32
      %s35 = ssub.s32 %s22, %s34
      %p36 = scmp.eq.s32.totalorder %s35, 0
      %s38 = sadd.s32 %s37, 1
      %s39 = scalar_select %p36, %s37, %s38
      %p42 = pneg %p36
      %p43 = scmp.eq.s32.totalorder %s15, 3
      %p44 = por %p42, %p43
      %p45 = scmp.ne.s32.totalorder %s37, %s40
      %p46 = scmp.eq.s32.totalorder %s15, 0
      %p47 = por %p45, %p46
      %p48 = scmp.ne.s32.totalorder %s37, %s40
      %p49 = scmp.eq.s32.totalorder %s20, 3
      %p50 = por %p48, %p49
      %p51 = scmp.ne.s32.totalorder %s40, %s41
      %p52 = scmp.eq.s32.totalorder %s20, 0
      %p53 = por %p51, %p52
      %p54 = scmp.ne.s32.totalorder %s40, %s41
      %p55 = scmp.eq.s32.totalorder %s21, 3
      %p56 = por %p54, %p55
      %p58 = scmp.ne.s32.totalorder %s41, %s57
      %p59 = scmp.eq.s32.totalorder %s21, 0
      %p60 = por %p58, %p59
      %s61 = ssub.s32 %s22, %s34
      %p62 = scmp.eq.s32.totalorder %s61, 0
      %s64 = sadd.s32 %s63, 1
      %s65 = scalar_select %p62, %s63, %s64
      %p68 = pneg %p62
      %p69 = scmp.eq.s32.totalorder %s15, 3
      %p70 = por %p68, %p69
      %p71 = scmp.ne.s32.totalorder %s63, %s66
      %p72 = scmp.eq.s32.totalorder %s15, 0
      %p73 = por %p71, %p72
      %p74 = scmp.ne.s32.totalorder %s63, %s66
      %p75 = scmp.eq.s32.totalorder %s20, 3
      %p76 = por %p74, %p75
      %p77 = scmp.ne.s32.totalorder %s66, %s67
      %p78 = scmp.eq.s32.totalorder %s20, 0
      %p79 = por %p77, %p78
      %p80 = scmp.ne.s32.totalorder %s66, %s67
      %p81 = scmp.eq.s32.totalorder %s21, 3
      %p82 = por %p80, %p81
      %p84 = scmp.ne.s32.totalorder %s67, %s83
      %p85 = scmp.eq.s32.totalorder %s21, 0
      %p86 = por %p84, %p85
      %s87 = ssub.s32 %s23, %s30
      %p88 = scmp.eq.s32.totalorder %s87, 0
      %s90 = sadd.s32 %s89, 1
      %s91 = scalar_select %p88, %s89, %s90
      %p94 = pneg %p88
      %p95 = scmp.eq.s32.totalorder %s15, 3
      %p96 = por %p94, %p95
      %p97 = scmp.ne.s32.totalorder %s89, %s92
      %p98 = scmp.eq.s32.totalorder %s15, 0
      %p99 = por %p97, %p98
      %p100 = scmp.ne.s32.totalorder %s89, %s92
      %p101 = scmp.eq.s32.totalorder %s20, 3
      %p102 = por %p100, %p101
      %p103 = scmp.ne.s32.totalorder %s92, %s93
      %p104 = scmp.eq.s32.totalorder %s20, 0
      %p105 = por %p103, %p104
      %p106 = scmp.ne.s32.totalorder %s92, %s93
      %p107 = scmp.eq.s32.totalorder %s21, 3
      %p108 = por %p106, %p107
      %p110 = scmp.ne.s32.totalorder %s93, %s109
      %p111 = scmp.eq.s32.totalorder %s21, 0
      %p112 = por %p110, %p111
      %s113 = ssub.s32 %s23, %s30
      %p114 = scmp.eq.s32.totalorder %s113, 0
      %s116 = sadd.s32 %s115, 1
      %s117 = scalar_select %p114, %s115, %s116
      %p120 = pneg %p114
      %p121 = scmp.eq.s32.totalorder %s15, 3
      %p122 = por %p120, %p121
      %p123 = scmp.ne.s32.totalorder %s115, %s118
      %p124 = scmp.eq.s32.totalorder %s15, 0
      %p125 = por %p123, %p124
      %p126 = scmp.ne.s32.totalorder %s115, %s118
      %p127 = scmp.eq.s32.totalorder %s20, 3
      %p128 = por %p126, %p127
      %p129 = scmp.ne.s32.totalorder %s118, %s119
      %p130 = scmp.eq.s32.totalorder %s20, 0
      %p131 = por %p129, %p130
      %p132 = scmp.ne.s32.totalorder %s118, %s119
      %p133 = scmp.eq.s32.totalorder %s21, 3
      %p134 = por %p132, %p133
      %p136 = scmp.ne.s32.totalorder %s119, %s135
      %p137 = scmp.eq.s32.totalorder %s21, 0
      %p138 = por %p136, %p137
      %s139 = ssub.s32 %s23, %s30
      %p140 = scmp.eq.s32.totalorder %s139, 0
      %s142 = sadd.s32 %s141, 1
      %s143 = scalar_select %p140, %s141, %s142
      %p146 = pneg %p140
      %p147 = scmp.eq.s32.totalorder %s15, 3
      %p148 = por %p146, %p147
      %p149 = scmp.ne.s32.totalorder %s141, %s144
      %p150 = scmp.eq.s32.totalorder %s15, 0
      %p151 = por %p149, %p150
      %p152 = scmp.ne.s32.totalorder %s141, %s144
      %p153 = scmp.eq.s32.totalorder %s20, 3
      %p154 = por %p152, %p153
      %p155 = scmp.ne.s32.totalorder %s144, %s145
      %p156 = scmp.eq.s32.totalorder %s20, 0
      %p157 = por %p155, %p156
      %p158 = scmp.ne.s32.totalorder %s144, %s145
      %p159 = scmp.eq.s32.totalorder %s21, 3
      %p160 = por %p158, %p159
      %p162 = scmp.ne.s32.totalorder %s145, %s161
      %p163 = scmp.eq.s32.totalorder %s21, 0
      %p164 = por %p162, %p163
      %s165 = ssub.s32 %s23, %s30
      %p166 = scmp.eq.s32.totalorder %s165, 0
      %s168 = sadd.s32 %s167, 1
      %s169 = scalar_select %p166, %s167, %s168
      %p172 = pneg %p166
      %p173 = scmp.eq.s32.totalorder %s15, 3
      %p174 = por %p172, %p173
      %p175 = scmp.ne.s32.totalorder %s167, %s170
      %p176 = scmp.eq.s32.totalorder %s15, 0
      %p177 = por %p175, %p176
      %p178 = scmp.ne.s32.totalorder %s167, %s170
      %p179 = scmp.eq.s32.totalorder %s20, 3
      %p180 = por %p178, %p179
      %p181 = scmp.ne.s32.totalorder %s170, %s171
      %p182 = scmp.eq.s32.totalorder %s20, 0
      %p183 = por %p181, %p182
      %p184 = scmp.ne.s32.totalorder %s170, %s171
      %p185 = scmp.eq.s32.totalorder %s21, 3
      %p186 = por %p184, %p185
      %p188 = scmp.ne.s32.totalorder %s171, %s187
      %p189 = scmp.eq.s32.totalorder %s21, 0
      %p190 = por %p188, %p189
      %s191 = ssub.s32 %s22, %s34
      %s192 = ssub.s32 %s23, %s30
      %s193 = sor.u32 %s191, %s192
      %p194 = scmp.eq.s32.totalorder %s193, 0
      %s196 = sadd.s32 %s195, 1
      %s197 = scalar_select %p194, %s195, %s196
      %p200 = pneg %p194
      %p201 = scmp.eq.s32.totalorder %s15, 3
      %p202 = por %p200, %p201
      %p203 = scmp.ne.s32.totalorder %s195, %s198
      %p204 = scmp.eq.s32.totalorder %s15, 0
      %p205 = por %p203, %p204
      %p206 = scmp.ne.s32.totalorder %s195, %s198
      %p207 = scmp.eq.s32.totalorder %s20, 3
      %p208 = por %p206, %p207
      %p209 = scmp.ne.s32.totalorder %s198, %s199
      %p210 = scmp.eq.s32.totalorder %s20, 0
      %p211 = por %p209, %p210
      %p212 = scmp.ne.s32.totalorder %s198, %s199
      %p213 = scmp.eq.s32.totalorder %s21, 3
      %p214 = por %p212, %p213
      %p216 = scmp.ne.s32.totalorder %s199, %s215
      %p217 = scmp.eq.s32.totalorder %s21, 0
      %p218 = por %p216, %p217
      %s219 = ssub.s32 %s22, %s34
      %p220 = scmp.eq.s32.totalorder %s219, 0
      %s222 = sadd.s32 %s221, 1
      %s223 = scalar_select %p220, %s221, %s222
      %p226 = pneg %p220
      %p227 = scmp.eq.s32.totalorder %s15, 3
      %p228 = por %p226, %p227
      %p229 = scmp.ne.s32.totalorder %s221, %s224
      %p230 = scmp.eq.s32.totalorder %s15, 0
      %p231 = por %p229, %p230
      %p232 = scmp.ne.s32.totalorder %s221, %s224
      %p233 = scmp.eq.s32.totalorder %s20, 3
      %p234 = por %p232, %p233
      %p235 = scmp.ne.s32.totalorder %s224, %s225
      %p236 = scmp.eq.s32.totalorder %s20, 0
      %p237 = por %p235, %p236
      %p238 = scmp.ne.s32.totalorder %s224, %s225
      %p239 = scmp.eq.s32.totalorder %s21, 3
      %p240 = por %p238, %p239
      %p242 = scmp.ne.s32.totalorder %s225, %s241
      %p243 = scmp.eq.s32.totalorder %s21, 0
      %p244 = por %p242, %p243
      %s245 = ssub.s32 %s22, %s34
      %p246 = scmp.eq.s32.totalorder %s245, 0
      %s248 = sadd.s32 %s247, 1
      %s249 = scalar_select %p246, %s247, %s248
      %p252 = pneg %p246
      %p253 = scmp.eq.s32.totalorder %s15, 3
      %p254 = por %p252, %p253
      %p255 = scmp.ne.s32.totalorder %s247, %s250
      %p256 = scmp.eq.s32.totalorder %s15, 0
      %p257 = por %p255, %p256
      %p258 = scmp.ne.s32.totalorder %s247, %s250
      %p259 = scmp.eq.s32.totalorder %s20, 3
      %p260 = por %p258, %p259
      %p261 = scmp.ne.s32.totalorder %s250, %s251
      %p262 = scmp.eq.s32.totalorder %s20, 0
      %p263 = por %p261, %p262
      %p264 = scmp.ne.s32.totalorder %s250, %s251
      %p265 = scmp.eq.s32.totalorder %s21, 3
      %p266 = por %p264, %p265
      %p268 = scmp.ne.s32.totalorder %s251, %s267
      %p269 = scmp.eq.s32.totalorder %s21, 0
      %p270 = por %p268, %p269
      %p271 = scmp.le.s32.totalorder 1, %s15
      %p272 = scmp.lt.s32.totalorder %s15, 5
      %p273 = pnand %p271, %p272
      %p274 = pneg %p273
      // Predicated region
      $region9: #{_frequency_repulsion_jit.1} parent=5 // pred_check
        _
      $region10: #{_frequency_repulsion_jit.1} parent=5 // pred_check_branch
        %276 = sbr.rel (%p273) target = $region12
      $region11: #{_frequency_repulsion_jit.1} parent=5 // pred_region
        %s277 = ssub.s32 %s15, 1
      $region12: #{_frequency_repulsion_jit.1} parent=5 // pred_fallthru
        _
      %p278 = scmp.lt.s32.totalorder %s15, 4
      // Predicated region
      $region13: #{_frequency_repulsion_jit.1} parent=5 // pred_check
        %p279 = pneg %p278
      $region14: #{_frequency_repulsion_jit.1} parent=5 // pred_check_branch
        %281 = sbr.rel (%p279) target = $region16
      $region15: #{_frequency_repulsion_jit.1} parent=5 // pred_region
        // Predicated region
        $region17: #{_frequency_repulsion_jit.1} parent=15 // pred_check
          %p282 = pneg %p47
        $region18: #{_frequency_repulsion_jit.1} parent=15 // pred_check_branch
          %284 = sbr.rel (%p282) target = $region20
        $region19: #{_frequency_repulsion_jit.1} parent=15 // pred_region
          %s285 = smul.u32 16, %s22
          %p286 = scmp.lt.s32.totalorder %s285, 31
          %s287 = scalar_select %p286, %s285, 31
          %s288 = smul.addr %s287, 8
          %s289 = scalar_lea.vmem %s0, %s288
          %s290 = smul.u32 16, %s22
        $region20: #{_frequency_repulsion_jit.1} parent=15 // pred_fallthru
          _
        // Predicated region
        $region21: #{_frequency_repulsion_jit.1} parent=15 // pred_check
          %p291 = pneg %p73
        $region22: #{_frequency_repulsion_jit.1} parent=15 // pred_check_branch
          %293 = sbr.rel (%p291) target = $region24
        $region23: #{_frequency_repulsion_jit.1} parent=15 // pred_region
          %s294 = smul.u32 16, %s22
          %p295 = scmp.lt.s32.totalorder %s294, 31
          %s296 = scalar_select %p295, %s294, 31
          %s297 = smul.addr %s296, 8
          %s298 = scalar_lea.vmem %s1, %s297
          %s299 = smul.u32 16, %s22
        $region24: #{_frequency_repulsion_jit.1} parent=15 // pred_fallthru
          _
        // Predicated region
        $region25: #{_frequency_repulsion_jit.1} parent=15 // pred_check
          %p300 = pneg %p99
        $region26: #{_frequency_repulsion_jit.1} parent=15 // pred_check_branch
          %302 = sbr.rel (%p300) target = $region28
        $region27: #{_frequency_repulsion_jit.1} parent=15 // pred_region
          %p303 = scmp.lt.s32.totalorder %s23, 1
          %s304 = scalar_select %p303, %s23, 1
          %s305 = scalar_lea.vmem %s2, %s304
        $region28: #{_frequency_repulsion_jit.1} parent=15 // pred_fallthru
          _
        // Predicated region
        $region29: #{_frequency_repulsion_jit.1} parent=15 // pred_check
          %p306 = pneg %p125
        $region30: #{_frequency_repulsion_jit.1} parent=15 // pred_check_branch
          %308 = sbr.rel (%p306) target = $region32
        $region31: #{_frequency_repulsion_jit.1} parent=15 // pred_region
          %p309 = scmp.lt.s32.totalorder %s23, 1
          %s310 = scalar_select %p309, %s23, 1
          %s311 = scalar_lea.vmem %s3, %s310
        $region32: #{_frequency_repulsion_jit.1} parent=15 // pred_fallthru
          _
        // Predicated region
        $region33: #{_frequency_repulsion_jit.1} parent=15 // pred_check
          %p312 = pneg %p151
        $region34: #{_frequency_repulsion_jit.1} parent=15 // pred_check_branch
          %314 = sbr.rel (%p312) target = $region36
        $region35: #{_frequency_repulsion_jit.1} parent=15 // pred_region
          %s315 = smul.u32 16, %s23
          %p316 = scmp.lt.s32.totalorder %s315, 31
          %s317 = scalar_select %p316, %s315, 31
          %s318 = smul.addr %s317, 8
          %s319 = scalar_lea.vmem %s4, %s318
          %s320 = smul.u32 16, %s23
        $region36: #{_frequency_repulsion_jit.1} parent=15 // pred_fallthru
          _
        // Predicated region
        $region37: #{_frequency_repulsion_jit.1} parent=15 // pred_check
          %p321 = pneg %p177
        $region38: #{_frequency_repulsion_jit.1} parent=15 // pred_check_branch
          %323 = sbr.rel (%p321) target = $region40
        $region39: #{_frequency_repulsion_jit.1} parent=15 // pred_region
          %s324 = smul.u32 16, %s23
          %p325 = scmp.lt.s32.totalorder %s324, 31
          %s326 = scalar_select %p325, %s324, 31
          %s327 = smul.addr %s326, 8
          %s328 = scalar_lea.vmem %s5, %s327
          %s329 = smul.u32 16, %s23
        $region40: #{_frequency_repulsion_jit.1} parent=15 // pred_fallthru
          _
        // Predicated region
        $region41: #{_frequency_repulsion_jit.1} parent=15 // pred_check
          %p330 = pneg %p205
        $region42: #{_frequency_repulsion_jit.1} parent=15 // pred_check_branch
          %332 = sbr.rel (%p330) target = $region44
        $region43: #{_frequency_repulsion_jit.1} parent=15 // pred_region
          %s333 = sand.u32 %s195, 1
          %s334 = sand.u32 %s195, 1
          %s335 = smul.addr %s334, 32
          %s336 = scalar_lea.vmem [#allocation3], %s335
          %s337 = smul.u32 4, %s22
          %s338 = smul.addr %s337, 2
          %s339 = sadd.s32 %s23, %s338
          %s340 = smul.addr %s339, 8
          %s341 = scalar_lea.vmem %s6, %s340
          // Predicated region
          $region45: #{_frequency_repulsion_jit.1} parent=43 // pred_check
            _
          $region46: #{_frequency_repulsion_jit.1} parent=43 // pred_check_branch
            %343 = sbr.rel (0) target = $region48
          $region47: #{_frequency_repulsion_jit.1} parent=43 // pred_region
            // Predicated region
            $region49: #{_frequency_repulsion_jit.1} parent=47 // pred_check
              _
            $region50: #{_frequency_repulsion_jit.1} parent=47 // pred_check_branch
              %345 = sbr.rel (0) target = $region52
            $region51: #{_frequency_repulsion_jit.1} parent=47 // pred_region
              // Predicated region
              $region64: #{_frequency_repulsion_jit.1} parent=51 // pred_check
                _
              $region65: #{_frequency_repulsion_jit.1} parent=51 // pred_check_branch
                %367 = sbr.rel (0) target = $region67
              $region66: #{_frequency_repulsion_jit.1} parent=51 // pred_region
                loop: start=0, step=1, limit=1
                $region68: #{_frequency_repulsion_jit.1} parent=66 // loop_pre_header
                  _
                $region69: #{_frequency_repulsion_jit.1} parent=66 // loop_header
                  %s369 = sphi 0, %s373
                  %p370 = scmp.ge.s32.totalorder %s369, 1
                  %s374 = sphi %s341, %s341
                  %s375 = sphi %s336, %s336
                $region70: #{_frequency_repulsion_jit.1} parent=66 // loop_header_branch
                  %372 = sbr.rel (%p370) target = $region74
                $region71: #{_frequency_repulsion_jit.1} parent=66 // loop_body
                  %v376 = vld [vmem:[%s374] sm:$0xff]
                  %377 = vst [vmem:[%s375] sm:$0xff] %v376
                  %v378 = vld [vmem:[%s374 + $0x10] sm:$0xff]
                  %379 = vst [vmem:[%s375 + $0x8] sm:$0xff] %v378
                  %v380 = vld [vmem:[%s374 + $0x20] sm:$0xff]
                  %381 = vst [vmem:[%s375 + $0x10] sm:$0xff] %v380
                  %v382 = vld [vmem:[%s374 + $0x30] sm:$0xff]
                  %383 = vst [vmem:[%s375 + $0x18] sm:$0xff] %v382
                $region72: #{_frequency_repulsion_jit.1} parent=66 // loop_footer
                  %s373 = sadd.s32 1, %s369
                $region73: #{_frequency_repulsion_jit.1} parent=66 // loop_footer_branch
                  %368 = sbr.rel target = $region69
                $region74: #{_frequency_repulsion_jit.1} parent=66 // loop_exit
                  _
              $region67: #{_frequency_repulsion_jit.1} parent=51 // pred_fallthru
                _
              // Predicated region
              $region75: #{_frequency_repulsion_jit.1} parent=51 // pred_check
                _
              $region76: #{_frequency_repulsion_jit.1} parent=51 // pred_check_branch
                %385 = sbr.rel target = $region78
              $region77: #{_frequency_repulsion_jit.1} parent=51 // pred_region
                _
              $region78: #{_frequency_repulsion_jit.1} parent=51 // pred_fallthru
                _
            $region52: #{_frequency_repulsion_jit.1} parent=47 // pred_fallthru
              _
            // Predicated region
            $region53: #{_frequency_repulsion_jit.1} parent=47 // pred_check
              _
            $region54: #{_frequency_repulsion_jit.1} parent=47 // pred_check_branch
              %347 = sbr.rel target = $region56
            $region55: #{_frequency_repulsion_jit.1} parent=47 // pred_region
              %s349 = ssub.s32 256, 1
              loop: start=0, step=1, limit=1
              $region57: #{_frequency_repulsion_jit.1} parent=55 // loop_pre_header
                _
              $region58: #{_frequency_repulsion_jit.1} parent=55 // loop_header
                %s351 = sphi 0, %s355
                %p352 = scmp.ge.s32.totalorder %s351, 1
                %s356 = sphi %s341, %s341
                %s357 = sphi %s336, %s336
              $region59: #{_frequency_repulsion_jit.1} parent=55 // loop_header_branch
                %354 = sbr.rel (%p352) target = $region63
              $region60: #{_frequency_repulsion_jit.1} parent=55 // loop_body
                %v358 = vld [vmem:[%s356] sm:%s349]
                %359 = vst [vmem:[%s357] sm:%s349] %v358
                %v360 = vld [vmem:[%s356 + $0x10] sm:%s349]
                %361 = vst [vmem:[%s357 + $0x8] sm:%s349] %v360
                %v362 = vld [vmem:[%s356 + $0x20] sm:%s349]
                %363 = vst [vmem:[%s357 + $0x10] sm:%s349] %v362
                %v364 = vld [vmem:[%s356 + $0x30] sm:%s349]
                %365 = vst [vmem:[%s357 + $0x18] sm:%s349] %v364
              $region61: #{_frequency_repulsion_jit.1} parent=55 // loop_footer
                %s355 = sadd.s32 1, %s351
              $region62: #{_frequency_repulsion_jit.1} parent=55 // loop_footer_branch
                %350 = sbr.rel target = $region58
              $region63: #{_frequency_repulsion_jit.1} parent=55 // loop_exit
                _
            $region56: #{_frequency_repulsion_jit.1} parent=47 // pred_fallthru
              _
          $region48: #{_frequency_repulsion_jit.1} parent=43 // pred_fallthru
            _
          %386 = vnop
        $region44: #{_frequency_repulsion_jit.1} parent=15 // pred_fallthru
          _
      $region16: #{_frequency_repulsion_jit.1} parent=5 // pred_fallthru
        _
      %p387 = scmp.le.s32.totalorder 1, %s15
      %p388 = scmp.lt.s32.totalorder %s15, 5
      %p389 = pnand %p387, %p388
      %p390 = pneg %p389
      // Predicated region
      $region79: #{_frequency_repulsion_jit.1} parent=5 // pred_check
        _
      $region80: #{_frequency_repulsion_jit.1} parent=5 // pred_check_branch
        %392 = sbr.rel (%p389) target = $region82
      $region81: #{_frequency_repulsion_jit.1} parent=5 // pred_region
        %s393 = ssub.s32 %s15, 1
        %s394 = sand.u32 %s198, 1
        %s395 = sand.u32 %s198, 1
        %s396 = smul.addr %s395, 32
        %s397 = scalar_lea.vmem [#allocation3], %s396
        // Predicated region
        $region83: #{_frequency_repulsion_jit.1} parent=81 // pred_check
          %p398 = pneg %p211
        $region84: #{_frequency_repulsion_jit.1} parent=81 // pred_check_branch
          %400 = sbr.rel (%p398) target = $region86
        $region85: #{_frequency_repulsion_jit.1} parent=81 // pred_region
          _
        $region86: #{_frequency_repulsion_jit.1} parent=81 // pred_fallthru
          _
        %s401 = smul.u32 16, %s24
        %p402 = scmp.lt.s32.totalorder %s401, 31
        %s403 = scalar_select %p402, %s401, 31
        %s404 = smul.addr %s403, 8
        %s405 = scalar_lea.vmem %s0, %s404
        %p406 = pneg %p53
        %p407 = pneg %p50
        %s408 = smul.u32 16, %s24
        %p409 = scmp.lt.s32.totalorder %s408, 31
        %s410 = scalar_select %p409, %s408, 31
        %s411 = smul.addr %s410, 8
        %s412 = scalar_lea.vmem %s1, %s411
        %p413 = pneg %p79
        %p414 = pneg %p76
        %p415 = scmp.lt.s32.totalorder %s25, 1
        %s416 = scalar_select %p415, %s25, 1
        %s417 = scalar_lea.vmem %s2, %s416
        %p418 = pneg %p105
        %p419 = pneg %p102
        %p420 = scmp.lt.s32.totalorder %s25, 1
        %s421 = scalar_select %p420, %s25, 1
        %s422 = scalar_lea.vmem %s3, %s421
        %p423 = pneg %p131
        %p424 = pneg %p128
        %s425 = smul.u32 16, %s25
        %p426 = scmp.lt.s32.totalorder %s425, 31
        %s427 = scalar_select %p426, %s425, 31
        %s428 = smul.addr %s427, 8
        %s429 = scalar_lea.vmem %s4, %s428
        %p430 = pneg %p157
        %p431 = pneg %p154
        %s432 = smul.u32 16, %s25
        %p433 = scmp.lt.s32.totalorder %s432, 31
        %s434 = scalar_select %p433, %s432, 31
        %s435 = smul.addr %s434, 8
        %s436 = scalar_lea.vmem %s5, %s435
        %p437 = pneg %p183
        %p438 = pneg %p180
        %s439 = sand.u32 %s198, 1
        %s440 = sand.u32 %s198, 1
        %s441 = smul.addr %s440, 32
        %s442 = scalar_lea.vmem [#allocation3], %s441
        %p443 = pneg %p211
        %p444 = pneg %p208
        %p445 = pneg %p237
        %p446 = pneg %p234
        %s447 = smul.u32 16, %s24
        %p448 = scmp.lt.s32.totalorder %s447, 31
        %s449 = scalar_select %p448, %s447, 31
        %s450 = smul.addr %s449, 8
        %s451 = scalar_lea.vmem %s7, %s450
        %p452 = pneg %p263
        %p453 = pneg %p260
        %s454 = smul.u32 16, %s24
        %p455 = scmp.lt.s32.totalorder %s454, 31
        %s456 = scalar_select %p455, %s454, 31
        %s457 = smul.addr %s456, 8
        %s458 = scalar_lea.vmem %s8, %s457
        %s459 = smul.u32 16, %s24
        %p460 = scmp.lt.s32.totalorder %s459, 31
        %s461 = scalar_select %p460, %s459, 31
        %s462 = smul.addr %s461, 8
        %s463 = scalar_lea.vmem %s0, %s462
        %s464 = smul.u32 16, %s24
        %s465 = smul.u32 16, %s24
        %p466 = scmp.lt.s32.totalorder %s465, 31
        %s467 = scalar_select %p466, %s465, 31
        %s468 = smul.addr %s467, 8
        %s469 = scalar_lea.vmem %s1, %s468
        %s470 = smul.u32 16, %s24
        %p471 = scmp.lt.s32.totalorder %s25, 1
        %s472 = scalar_select %p471, %s25, 1
        %s473 = scalar_lea.vmem %s2, %s472
        %p474 = scmp.lt.s32.totalorder %s25, 1
        %s475 = scalar_select %p474, %s25, 1
        %s476 = scalar_lea.vmem %s3, %s475
        %s477 = smul.u32 16, %s25
        %p478 = scmp.lt.s32.totalorder %s477, 31
        %s479 = scalar_select %p478, %s477, 31
        %s480 = smul.addr %s479, 8
        %s481 = scalar_lea.vmem %s4, %s480
        %s482 = smul.u32 16, %s25
        %s483 = smul.u32 16, %s25
        %p484 = scmp.lt.s32.totalorder %s483, 31
        %s485 = scalar_select %p484, %s483, 31
        %s486 = smul.addr %s485, 8
        %s487 = scalar_lea.vmem %s5, %s486
        %s488 = smul.u32 16, %s25
        %s489 = smul.u32 4, %s24
        %s490 = smul.u32 16, %s24
        %p491 = scmp.lt.s32.totalorder %s490, 31
        %s492 = scalar_select %p491, %s490, 31
        %s493 = smul.addr %s492, 8
        %s494 = scalar_lea.vmem %s7, %s493
        %s495 = smul.u32 16, %s24
        %s496 = smul.u32 16, %s24
        %p497 = scmp.lt.s32.totalorder %s496, 31
        %s498 = scalar_select %p497, %s496, 31
        %s499 = smul.addr %s498, 8
        %s500 = scalar_lea.vmem %s8, %s499
        %s501 = smul.u32 16, %s24
        %p502 = scmp.eq.s32.totalorder %s25, 0
        // Predicated region
        $region87: #{_frequency_repulsion_jit.1} parent=81 // pred_check
          %p503 = pneg %p502
        $region88: #{_frequency_repulsion_jit.1} parent=81 // pred_check_branch
          %505 = sbr.rel (%p503) target = $region90
        $region89: #{_frequency_repulsion_jit.1} parent=81 // pred_region
          %506 = vst [vmem:[#allocation2] sm:$0xff] 0.0
          %507 = vst [vmem:[#allocation2 + $0x8] sm:$0xff] 0.0
          %508 = vst [vmem:[#allocation2 + $0x10] sm:$0xff] 0.0
          %509 = vst [vmem:[#allocation2 + $0x18] sm:$0xff] 0.0
          %510 = vst [vmem:[#allocation2 + $0x20] sm:$0xff] 0.0
          %511 = vst [vmem:[#allocation2 + $0x28] sm:$0xff] 0.0
          %512 = vst [vmem:[#allocation2 + $0x30] sm:$0xff] 0.0
          %513 = vst [vmem:[#allocation2 + $0x38] sm:$0xff] 0.0
          %514 = vst [vmem:[#allocation2 + $0x40] sm:$0xff] 0.0
          %515 = vst [vmem:[#allocation2 + $0x48] sm:$0xff] 0.0
          %516 = vst [vmem:[#allocation2 + $0x50] sm:$0xff] 0.0
          %517 = vst [vmem:[#allocation2 + $0x58] sm:$0xff] 0.0
          %518 = vst [vmem:[#allocation2 + $0x60] sm:$0xff] 0.0
          %519 = vst [vmem:[#allocation2 + $0x68] sm:$0xff] 0.0
          %520 = vst [vmem:[#allocation2 + $0x70] sm:$0xff] 0.0
          %521 = vst [vmem:[#allocation2 + $0x78] sm:$0xff] 0.0
        $region90: #{_frequency_repulsion_jit.1} parent=81 // pred_fallthru
          _
        %v522 = vld [vmem:[%s463] sm:$0xff]
        %v523 = vld [vmem:[%s463 + $0x8] sm:$0xff]
        %v524 = vld [vmem:[%s463 + $0x10] sm:$0xff]
        %v525 = vld [vmem:[%s463 + $0x18] sm:$0xff]
        %v526 = vld [vmem:[%s463 + $0x20] sm:$0xff]
        %v527 = vld [vmem:[%s463 + $0x28] sm:$0xff]
        %v528 = vld [vmem:[%s463 + $0x30] sm:$0xff]
        %v529 = vld [vmem:[%s463 + $0x38] sm:$0xff]
        %v530 = vld [vmem:[%s463 + $0x40] sm:$0xff]
        %v531 = vld [vmem:[%s463 + $0x48] sm:$0xff]
        %v532 = vld [vmem:[%s463 + $0x50] sm:$0xff]
        %v533 = vld [vmem:[%s463 + $0x58] sm:$0xff]
        %v534 = vld [vmem:[%s463 + $0x60] sm:$0xff]
        %v535 = vld [vmem:[%s463 + $0x68] sm:$0xff]
        %v536 = vld [vmem:[%s463 + $0x70] sm:$0xff]
        %v537 = vld [vmem:[%s463 + $0x78] sm:$0xff]
        %v538 = vld [vmem:[%s473] sm:$0x1]
        %540 = vset.pattern.permute.xlu0 0
        %541 = vperm.xlu0 %540, %v522
        %v542 = vpop.permute.xlu0 %541
        %545 = vset.pattern.permute.xlu0 0
        %546 = vperm.xlu0 %545, %v523
        %v547 = vpop.permute.xlu0 %546
        %550 = vset.pattern.permute.xlu0 0
        %551 = vperm.xlu0 %550, %v524
        %v552 = vpop.permute.xlu0 %551
        %555 = vset.pattern.permute.xlu0 0
        %556 = vperm.xlu0 %555, %v525
        %v557 = vpop.permute.xlu0 %556
        %560 = vset.pattern.permute.xlu0 0
        %561 = vperm.xlu0 %560, %v526
        %v562 = vpop.permute.xlu0 %561
        %565 = vset.pattern.permute.xlu0 0
        %566 = vperm.xlu0 %565, %v527
        %v567 = vpop.permute.xlu0 %566
        %570 = vset.pattern.permute.xlu0 0
        %571 = vperm.xlu0 %570, %v528
        %v572 = vpop.permute.xlu0 %571
        %575 = vset.pattern.permute.xlu0 0
        %576 = vperm.xlu0 %575, %v529
        %v577 = vpop.permute.xlu0 %576
        %580 = vset.pattern.permute.xlu0 0
        %581 = vperm.xlu0 %580, %v530
        %v582 = vpop.permute.xlu0 %581
        %585 = vset.pattern.permute.xlu0 0
        %586 = vperm.xlu0 %585, %v531
        %v587 = vpop.permute.xlu0 %586
        %590 = vset.pattern.permute.xlu0 0
        %591 = vperm.xlu0 %590, %v532
        %v592 = vpop.permute.xlu0 %591
        %595 = vset.pattern.permute.xlu0 0
        %596 = vperm.xlu0 %595, %v533
        %v597 = vpop.permute.xlu0 %596
        %600 = vset.pattern.permute.xlu0 0
        %601 = vperm.xlu0 %600, %v534
        %v602 = vpop.permute.xlu0 %601
        %605 = vset.pattern.permute.xlu0 0
        %606 = vperm.xlu0 %605, %v535
        %v607 = vpop.permute.xlu0 %606
        %610 = vset.pattern.permute.xlu0 0
        %611 = vperm.xlu0 %610, %v536
        %v612 = vpop.permute.xlu0 %611
        %615 = vset.pattern.permute.xlu0 0
        %616 = vperm.xlu0 %615, %v537
        %v617 = vpop.permute.xlu0 %616
        %v620 = vlaneseq
        %v621 = vshrl.u32 %v620, 7
        %v622 = vsub.s32 0, %v621
        %v623 = vrot.slane %v538, %v622
        %v625 = vsub.f32 %v542, %v623
        %v626 = vsub.f32 %v547, %v623
        %v627 = vsub.f32 %v552, %v623
        %v628 = vsub.f32 %v557, %v623
        %v629 = vsub.f32 %v562, %v623
        %v630 = vsub.f32 %v567, %v623
        %v631 = vsub.f32 %v572, %v623
        %v632 = vsub.f32 %v577, %v623
        %v633 = vsub.f32 %v582, %v623
        %v634 = vsub.f32 %v587, %v623
        %v635 = vsub.f32 %v592, %v623
        %v636 = vsub.f32 %v597, %v623
        %v637 = vsub.f32 %v602, %v623
        %v638 = vsub.f32 %v607, %v623
        %v639 = vsub.f32 %v612, %v623
        %v640 = vsub.f32 %v617, %v623
        %v641 = vld [vmem:[%s469] sm:$0xff]
        %v642 = vld [vmem:[%s469 + $0x8] sm:$0xff]
        %v643 = vld [vmem:[%s469 + $0x10] sm:$0xff]
        %v644 = vld [vmem:[%s469 + $0x18] sm:$0xff]
        %v645 = vld [vmem:[%s469 + $0x20] sm:$0xff]
        %v646 = vld [vmem:[%s469 + $0x28] sm:$0xff]
        %v647 = vld [vmem:[%s469 + $0x30] sm:$0xff]
        %v648 = vld [vmem:[%s469 + $0x38] sm:$0xff]
        %v649 = vld [vmem:[%s469 + $0x40] sm:$0xff]
        %v650 = vld [vmem:[%s469 + $0x48] sm:$0xff]
        %v651 = vld [vmem:[%s469 + $0x50] sm:$0xff]
        %v652 = vld [vmem:[%s469 + $0x58] sm:$0xff]
        %v653 = vld [vmem:[%s469 + $0x60] sm:$0xff]
        %v654 = vld [vmem:[%s469 + $0x68] sm:$0xff]
        %v655 = vld [vmem:[%s469 + $0x70] sm:$0xff]
        %v656 = vld [vmem:[%s469 + $0x78] sm:$0xff]
        %v657 = vld [vmem:[%s476] sm:$0x1]
        %659 = vset.pattern.permute.xlu0 0
        %660 = vperm.xlu0 %659, %v641
        %v661 = vpop.permute.xlu0 %660
        %664 = vset.pattern.permute.xlu0 0
        %665 = vperm.xlu0 %664, %v642
        %v666 = vpop.permute.xlu0 %665
        %669 = vset.pattern.permute.xlu0 0
        %670 = vperm.xlu0 %669, %v643
        %v671 = vpop.permute.xlu0 %670
        %674 = vset.pattern.permute.xlu0 0
        %675 = vperm.xlu0 %674, %v644
        %v676 = vpop.permute.xlu0 %675
        %679 = vset.pattern.permute.xlu0 0
        %680 = vperm.xlu0 %679, %v645
        %v681 = vpop.permute.xlu0 %680
        %684 = vset.pattern.permute.xlu0 0
        %685 = vperm.xlu0 %684, %v646
        %v686 = vpop.permute.xlu0 %685
        %689 = vset.pattern.permute.xlu0 0
        %690 = vperm.xlu0 %689, %v647
        %v691 = vpop.permute.xlu0 %690
        %694 = vset.pattern.permute.xlu0 0
        %695 = vperm.xlu0 %694, %v648
        %v696 = vpop.permute.xlu0 %695
        %699 = vset.pattern.permute.xlu0 0
        %700 = vperm.xlu0 %699, %v649
        %v701 = vpop.permute.xlu0 %700
        %704 = vset.pattern.permute.xlu0 0
        %705 = vperm.xlu0 %704, %v650
        %v706 = vpop.permute.xlu0 %705
        %709 = vset.pattern.permute.xlu0 0
        %710 = vperm.xlu0 %709, %v651
        %v711 = vpop.permute.xlu0 %710
        %714 = vset.pattern.permute.xlu0 0
        %715 = vperm.xlu0 %714, %v652
        %v716 = vpop.permute.xlu0 %715
        %719 = vset.pattern.permute.xlu0 0
        %720 = vperm.xlu0 %719, %v653
        %v721 = vpop.permute.xlu0 %720
        %724 = vset.pattern.permute.xlu0 0
        %725 = vperm.xlu0 %724, %v654
        %v726 = vpop.permute.xlu0 %725
        %729 = vset.pattern.permute.xlu0 0
        %730 = vperm.xlu0 %729, %v655
        %v731 = vpop.permute.xlu0 %730
        %734 = vset.pattern.permute.xlu0 0
        %735 = vperm.xlu0 %734, %v656
        %v736 = vpop.permute.xlu0 %735
        %v739 = vlaneseq
        %v740 = vshrl.u32 %v739, 7
        %v741 = vsub.s32 0, %v740
        %v742 = vrot.slane %v657, %v741
        %v744 = vsub.f32 %v661, %v742
        %v745 = vsub.f32 %v666, %v742
        %v746 = vsub.f32 %v671, %v742
        %v747 = vsub.f32 %v676, %v742
        %v748 = vsub.f32 %v681, %v742
        %v749 = vsub.f32 %v686, %v742
        %v750 = vsub.f32 %v691, %v742
        %v751 = vsub.f32 %v696, %v742
        %v752 = vsub.f32 %v701, %v742
        %v753 = vsub.f32 %v706, %v742
        %v754 = vsub.f32 %v711, %v742
        %v755 = vsub.f32 %v716, %v742
        %v756 = vsub.f32 %v721, %v742
        %v757 = vsub.f32 %v726, %v742
        %v758 = vsub.f32 %v731, %v742
        %v759 = vsub.f32 %v736, %v742
        %v760 = vmul.f32 %v625, %v625
        %v761 = vmul.f32 %v626, %v626
        %v762 = vmul.f32 %v627, %v627
        %v763 = vmul.f32 %v628, %v628
        %v764 = vmul.f32 %v629, %v629
        %v765 = vmul.f32 %v630, %v630
        %v766 = vmul.f32 %v631, %v631
        %v767 = vmul.f32 %v632, %v632
        %v768 = vmul.f32 %v633, %v633
        %v769 = vmul.f32 %v634, %v634
        %v770 = vmul.f32 %v635, %v635
        %v771 = vmul.f32 %v636, %v636
        %v772 = vmul.f32 %v637, %v637
        %v773 = vmul.f32 %v638, %v638
        %v774 = vmul.f32 %v639, %v639
        %v775 = vmul.f32 %v640, %v640
        %v776 = vmul.f32 %v744, %v744
        %v777 = vmul.f32 %v745, %v745
        %v778 = vmul.f32 %v746, %v746
        %v779 = vmul.f32 %v747, %v747
        %v780 = vmul.f32 %v748, %v748
        %v781 = vmul.f32 %v749, %v749
        %v782 = vmul.f32 %v750, %v750
        %v783 = vmul.f32 %v751, %v751
        %v784 = vmul.f32 %v752, %v752
        %v785 = vmul.f32 %v753, %v753
        %v786 = vmul.f32 %v754, %v754
        %v787 = vmul.f32 %v755, %v755
        %v788 = vmul.f32 %v756, %v756
        %v789 = vmul.f32 %v757, %v757
        %v790 = vmul.f32 %v758, %v758
        %v791 = vmul.f32 %v759, %v759
        %vm792 = vcmp.lt.f32.partialorder %v760, 4.0
        %vm793 = vcmp.lt.f32.partialorder %v761, 4.0
        %vm794 = vcmp.lt.f32.partialorder %v762, 4.0
        %vm795 = vcmp.lt.f32.partialorder %v763, 4.0
        %vm796 = vcmp.lt.f32.partialorder %v764, 4.0
        %vm797 = vcmp.lt.f32.partialorder %v765, 4.0
        %vm798 = vcmp.lt.f32.partialorder %v766, 4.0
        %vm799 = vcmp.lt.f32.partialorder %v767, 4.0
        %vm800 = vcmp.lt.f32.partialorder %v768, 4.0
        %vm801 = vcmp.lt.f32.partialorder %v769, 4.0
        %vm802 = vcmp.lt.f32.partialorder %v770, 4.0
        %vm803 = vcmp.lt.f32.partialorder %v771, 4.0
        %vm804 = vcmp.lt.f32.partialorder %v772, 4.0
        %vm805 = vcmp.lt.f32.partialorder %v773, 4.0
        %vm806 = vcmp.lt.f32.partialorder %v774, 4.0
        %vm807 = vcmp.lt.f32.partialorder %v775, 4.0
        %vm808 = vcmp.lt.f32.partialorder %v776, 4.0
        %vm809 = vcmp.lt.f32.partialorder %v777, 4.0
        %vm810 = vcmp.lt.f32.partialorder %v778, 4.0
        %vm811 = vcmp.lt.f32.partialorder %v779, 4.0
        %vm812 = vcmp.lt.f32.partialorder %v780, 4.0
        %vm813 = vcmp.lt.f32.partialorder %v781, 4.0
        %vm814 = vcmp.lt.f32.partialorder %v782, 4.0
        %vm815 = vcmp.lt.f32.partialorder %v783, 4.0
        %vm816 = vcmp.lt.f32.partialorder %v784, 4.0
        %vm817 = vcmp.lt.f32.partialorder %v785, 4.0
        %vm818 = vcmp.lt.f32.partialorder %v786, 4.0
        %vm819 = vcmp.lt.f32.partialorder %v787, 4.0
        %vm820 = vcmp.lt.f32.partialorder %v788, 4.0
        %vm821 = vcmp.lt.f32.partialorder %v789, 4.0
        %vm822 = vcmp.lt.f32.partialorder %v790, 4.0
        %vm823 = vcmp.lt.f32.partialorder %v791, 4.0
        %vm824 = vmand %vm792, %vm808
        %vm825 = vmand %vm793, %vm809
        %vm826 = vmand %vm794, %vm810
        %vm827 = vmand %vm795, %vm811
        %vm828 = vmand %vm796, %vm812
        %vm829 = vmand %vm797, %vm813
        %vm830 = vmand %vm798, %vm814
        %vm831 = vmand %vm799, %vm815
        %vm832 = vmand %vm800, %vm816
        %vm833 = vmand %vm801, %vm817
        %vm834 = vmand %vm802, %vm818
        %vm835 = vmand %vm803, %vm819
        %vm836 = vmand %vm804, %vm820
        %vm837 = vmand %vm805, %vm821
        %vm838 = vmand %vm806, %vm822
        %vm839 = vmand %vm807, %vm823
        %v840 = vadd.f32 %v760, %v776
        %v841 = vadd.f32 %v761, %v777
        %v842 = vadd.f32 %v762, %v778
        %v843 = vadd.f32 %v763, %v779
        %v844 = vadd.f32 %v764, %v780
        %v845 = vadd.f32 %v765, %v781
        %v846 = vadd.f32 %v766, %v782
        %v847 = vadd.f32 %v767, %v783
        %v848 = vadd.f32 %v768, %v784
        %v849 = vadd.f32 %v769, %v785
        %v850 = vadd.f32 %v770, %v786
        %v851 = vadd.f32 %v771, %v787
        %v852 = vadd.f32 %v772, %v788
        %v853 = vadd.f32 %v773, %v789
        %v854 = vadd.f32 %v774, %v790
        %v855 = vadd.f32 %v775, %v791
        %v856 = vadd.f32 %v840, 0.01
        %v857 = vadd.f32 %v841, 0.01
        %v858 = vadd.f32 %v842, 0.01
        %v859 = vadd.f32 %v843, 0.01
        %v860 = vadd.f32 %v844, 0.01
        %v861 = vadd.f32 %v845, 0.01
        %v862 = vadd.f32 %v846, 0.01
        %v863 = vadd.f32 %v847, 0.01
        %v864 = vadd.f32 %v848, 0.01
        %v865 = vadd.f32 %v849, 0.01
        %v866 = vadd.f32 %v850, 0.01
        %v867 = vadd.f32 %v851, 0.01
        %v868 = vadd.f32 %v852, 0.01
        %v869 = vadd.f32 %v853, 0.01
        %v870 = vadd.f32 %v854, 0.01
        %v871 = vadd.f32 %v855, 0.01
        %v872 = vrcp.pop %v856
        %v873 = vmul.f32 1.0, %v872
        %v874 = vrcp.pop %v857
        %v875 = vmul.f32 1.0, %v874
        %v876 = vrcp.pop %v858
        %v877 = vmul.f32 1.0, %v876
        %v878 = vrcp.pop %v859
        %v879 = vmul.f32 1.0, %v878
        %v880 = vrcp.pop %v860
        %v881 = vmul.f32 1.0, %v880
        %v882 = vrcp.pop %v861
        %v883 = vmul.f32 1.0, %v882
        %v884 = vrcp.pop %v862
        %v885 = vmul.f32 1.0, %v884
        %v886 = vrcp.pop %v863
        %v887 = vmul.f32 1.0, %v886
        %v888 = vrcp.pop %v864
        %v889 = vmul.f32 1.0, %v888
        %v890 = vrcp.pop %v865
        %v891 = vmul.f32 1.0, %v890
        %v892 = vrcp.pop %v866
        %v893 = vmul.f32 1.0, %v892
        %v894 = vrcp.pop %v867
        %v895 = vmul.f32 1.0, %v894
        %v896 = vrcp.pop %v868
        %v897 = vmul.f32 1.0, %v896
        %v898 = vrcp.pop %v869
        %v899 = vmul.f32 1.0, %v898
        %v900 = vrcp.pop %v870
        %v901 = vmul.f32 1.0, %v900
        %v902 = vrcp.pop %v871
        %v903 = vmul.f32 1.0, %v902
        %v904 = vsel %vm824, %v873, 0.0
        %v905 = vsel %vm825, %v875, 0.0
        %v906 = vsel %vm826, %v877, 0.0
        %v907 = vsel %vm827, %v879, 0.0
        %v908 = vsel %vm828, %v881, 0.0
        %v909 = vsel %vm829, %v883, 0.0
        %v910 = vsel %vm830, %v885, 0.0
        %v911 = vsel %vm831, %v887, 0.0
        %v912 = vsel %vm832, %v889, 0.0
        %v913 = vsel %vm833, %v891, 0.0
        %v914 = vsel %vm834, %v893, 0.0
        %v915 = vsel %vm835, %v895, 0.0
        %v916 = vsel %vm836, %v897, 0.0
        %v917 = vsel %vm837, %v899, 0.0
        %v918 = vsel %vm838, %v901, 0.0
        %v919 = vsel %vm839, %v903, 0.0
        %v920 = vld [vmem:[%s397] sm:$0xff]
        %v921 = vld [vmem:[%s397 + $0x8] sm:$0xff]
        %v922 = vld [vmem:[%s397 + $0x10] sm:$0xff]
        %v923 = vld [vmem:[%s397 + $0x18] sm:$0xff]
        %v924 = vunpack.c.0.s8 %v920
        %v925 = vunpack.c.1.s8 %v920
        %v926 = vunpack.c.2.s8 %v920
        %v927 = vunpack.c.3.s8 %v920
        %v928 = vunpack.c.0.s8 %v921
        %v929 = vunpack.c.1.s8 %v921
        %v930 = vunpack.c.2.s8 %v921
        %v931 = vunpack.c.3.s8 %v921
        %v932 = vunpack.c.0.s8 %v922
        %v933 = vunpack.c.1.s8 %v922
        %v934 = vunpack.c.2.s8 %v922
        %v935 = vunpack.c.3.s8 %v922
        %v936 = vunpack.c.0.s8 %v923
        %v937 = vunpack.c.1.s8 %v923
        %v938 = vunpack.c.2.s8 %v923
        %v939 = vunpack.c.3.s8 %v923
        %v940 = vcvt.s32.f32 %v924
        %v941 = vcvt.s32.f32 %v925
        %v942 = vcvt.s32.f32 %v926
        %v943 = vcvt.s32.f32 %v927
        %v944 = vcvt.s32.f32 %v928
        %v945 = vcvt.s32.f32 %v929
        %v946 = vcvt.s32.f32 %v930
        %v947 = vcvt.s32.f32 %v931
        %v948 = vcvt.s32.f32 %v932
        %v949 = vcvt.s32.f32 %v933
        %v950 = vcvt.s32.f32 %v934
        %v951 = vcvt.s32.f32 %v935
        %v952 = vcvt.s32.f32 %v936
        %v953 = vcvt.s32.f32 %v937
        %v954 = vcvt.s32.f32 %v938
        %v955 = vcvt.s32.f32 %v939
        %v956 = vmul.f32 %v904, %v940
        %v957 = vmul.f32 %v905, %v941
        %v958 = vmul.f32 %v906, %v942
        %v959 = vmul.f32 %v907, %v943
        %v960 = vmul.f32 %v908, %v944
        %v961 = vmul.f32 %v909, %v945
        %v962 = vmul.f32 %v910, %v946
        %v963 = vmul.f32 %v911, %v947
        %v964 = vmul.f32 %v912, %v948
        %v965 = vmul.f32 %v913, %v949
        %v966 = vmul.f32 %v914, %v950
        %v967 = vmul.f32 %v915, %v951
        %v968 = vmul.f32 %v916, %v952
        %v969 = vmul.f32 %v917, %v953
        %v970 = vmul.f32 %v918, %v954
        %v971 = vmul.f32 %v919, %v955
        %v972 = vlaneseq
        %v973 = vand.u32 %v972, 127
        %vm974 = vcmp.eq.s32.totalorder %v973, 0
        %vm975 = vcmp.eq.s32.totalorder %v973, 1
        %v976 = vld [vmem:[%s481] sm:$0xff]
        %v977 = vld [vmem:[%s481 + $0x8] sm:$0xff]
        %v978 = vld [vmem:[%s481 + $0x10] sm:$0xff]
        %v979 = vld [vmem:[%s481 + $0x18] sm:$0xff]
        %v980 = vld [vmem:[%s481 + $0x20] sm:$0xff]
        %v981 = vld [vmem:[%s481 + $0x28] sm:$0xff]
        %v982 = vld [vmem:[%s481 + $0x30] sm:$0xff]
        %v983 = vld [vmem:[%s481 + $0x38] sm:$0xff]
        %v984 = vld [vmem:[%s481 + $0x40] sm:$0xff]
        %v985 = vld [vmem:[%s481 + $0x48] sm:$0xff]
        %v986 = vld [vmem:[%s481 + $0x50] sm:$0xff]
        %v987 = vld [vmem:[%s481 + $0x58] sm:$0xff]
        %v988 = vld [vmem:[%s481 + $0x60] sm:$0xff]
        %v989 = vld [vmem:[%s481 + $0x68] sm:$0xff]
        %v990 = vld [vmem:[%s481 + $0x70] sm:$0xff]
        %v991 = vld [vmem:[%s481 + $0x78] sm:$0xff]
        %vm992 = vcmp.eq.s32.totalorder %v973, 2
        %v993 = vld [vmem:[%s487] sm:$0xff]
        %v994 = vld [vmem:[%s487 + $0x8] sm:$0xff]
        %v995 = vld [vmem:[%s487 + $0x10] sm:$0xff]
        %v996 = vld [vmem:[%s487 + $0x18] sm:$0xff]
        %v997 = vld [vmem:[%s487 + $0x20] sm:$0xff]
        %v998 = vld [vmem:[%s487 + $0x28] sm:$0xff]
        %v999 = vld [vmem:[%s487 + $0x30] sm:$0xff]
        %v1000 = vld [vmem:[%s487 + $0x38] sm:$0xff]
        %v1001 = vld [vmem:[%s487 + $0x40] sm:$0xff]
        %v1002 = vld [vmem:[%s487 + $0x48] sm:$0xff]
        %v1003 = vld [vmem:[%s487 + $0x50] sm:$0xff]
        %v1004 = vld [vmem:[%s487 + $0x58] sm:$0xff]
        %v1005 = vld [vmem:[%s487 + $0x60] sm:$0xff]
        %v1006 = vld [vmem:[%s487 + $0x68] sm:$0xff]
        %v1007 = vld [vmem:[%s487 + $0x70] sm:$0xff]
        %v1008 = vld [vmem:[%s487 + $0x78] sm:$0xff]
        %1010 = vset.pattern.permute.xlu0 0
        %1011 = vperm.xlu0 %1010, %v993
        %v1012 = vpop.permute.xlu0 %1011
        %1015 = vset.pattern.permute.xlu0 0
        %1016 = vperm.xlu0 %1015, %v994
        %v1017 = vpop.permute.xlu0 %1016
        %1020 = vset.pattern.permute.xlu0 0
        %1021 = vperm.xlu0 %1020, %v995
        %v1022 = vpop.permute.xlu0 %1021
        %1025 = vset.pattern.permute.xlu0 0
        %1026 = vperm.xlu0 %1025, %v996
        %v1027 = vpop.permute.xlu0 %1026
        %1030 = vset.pattern.permute.xlu0 0
        %1031 = vperm.xlu0 %1030, %v997
        %v1032 = vpop.permute.xlu0 %1031
        %1035 = vset.pattern.permute.xlu0 0
        %1036 = vperm.xlu0 %1035, %v998
        %v1037 = vpop.permute.xlu0 %1036
        %1040 = vset.pattern.permute.xlu0 0
        %1041 = vperm.xlu0 %1040, %v999
        %v1042 = vpop.permute.xlu0 %1041
        %1045 = vset.pattern.permute.xlu0 0
        %1046 = vperm.xlu0 %1045, %v1000
        %v1047 = vpop.permute.xlu0 %1046
        %1050 = vset.pattern.permute.xlu0 0
        %1051 = vperm.xlu0 %1050, %v1001
        %v1052 = vpop.permute.xlu0 %1051
        %1055 = vset.pattern.permute.xlu0 0
        %1056 = vperm.xlu0 %1055, %v1002
        %v1057 = vpop.permute.xlu0 %1056
        %1060 = vset.pattern.permute.xlu0 0
        %1061 = vperm.xlu0 %1060, %v1003
        %v1062 = vpop.permute.xlu0 %1061
        %1065 = vset.pattern.permute.xlu0 0
        %1066 = vperm.xlu0 %1065, %v1004
        %v1067 = vpop.permute.xlu0 %1066
        %1070 = vset.pattern.permute.xlu0 0
        %1071 = vperm.xlu0 %1070, %v1005
        %v1072 = vpop.permute.xlu0 %1071
        %1075 = vset.pattern.permute.xlu0 0
        %1076 = vperm.xlu0 %1075, %v1006
        %v1077 = vpop.permute.xlu0 %1076
        %1080 = vset.pattern.permute.xlu0 0
        %1081 = vperm.xlu0 %1080, %v1007
        %v1082 = vpop.permute.xlu0 %1081
        %1085 = vset.pattern.permute.xlu0 0
        %1086 = vperm.xlu0 %1085, %v1008
        %v1087 = vpop.permute.xlu0 %1086
        %v1089 = vsel %vm992, %v1012, 0.0
        %v1090 = vsel %vm992, %v1017, 0.0
        %v1091 = vsel %vm992, %v1022, 0.0
        %v1092 = vsel %vm992, %v1027, 0.0
        %v1093 = vsel %vm992, %v1032, 0.0
        %v1094 = vsel %vm992, %v1037, 0.0
        %v1095 = vsel %vm992, %v1042, 0.0
        %v1096 = vsel %vm992, %v1047, 0.0
        %v1097 = vsel %vm992, %v1052, 0.0
        %v1098 = vsel %vm992, %v1057, 0.0
        %v1099 = vsel %vm992, %v1062, 0.0
        %v1100 = vsel %vm992, %v1067, 0.0
        %v1101 = vsel %vm992, %v1072, 0.0
        %v1102 = vsel %vm992, %v1077, 0.0
        %v1103 = vsel %vm992, %v1082, 0.0
        %v1104 = vsel %vm992, %v1087, 0.0
        %1106 = vset.pattern.permute.xlu0 0
        %1107 = vperm.xlu0 %1106, %v976
        %v1108 = vpop.permute.xlu0 %1107
        %1111 = vset.pattern.permute.xlu0 0
        %1112 = vperm.xlu0 %1111, %v977
        %v1113 = vpop.permute.xlu0 %1112
        %1116 = vset.pattern.permute.xlu0 0
        %1117 = vperm.xlu0 %1116, %v978
        %v1118 = vpop.permute.xlu0 %1117
        %1121 = vset.pattern.permute.xlu0 0
        %1122 = vperm.xlu0 %1121, %v979
        %v1123 = vpop.permute.xlu0 %1122
        %1126 = vset.pattern.permute.xlu0 0
        %1127 = vperm.xlu0 %1126, %v980
        %v1128 = vpop.permute.xlu0 %1127
        %1131 = vset.pattern.permute.xlu0 0
        %1132 = vperm.xlu0 %1131, %v981
        %v1133 = vpop.permute.xlu0 %1132
        %1136 = vset.pattern.permute.xlu0 0
        %1137 = vperm.xlu0 %1136, %v982
        %v1138 = vpop.permute.xlu0 %1137
        %1141 = vset.pattern.permute.xlu0 0
        %1142 = vperm.xlu0 %1141, %v983
        %v1143 = vpop.permute.xlu0 %1142
        %1146 = vset.pattern.permute.xlu0 0
        %1147 = vperm.xlu0 %1146, %v984
        %v1148 = vpop.permute.xlu0 %1147
        %1151 = vset.pattern.permute.xlu0 0
        %1152 = vperm.xlu0 %1151, %v985
        %v1153 = vpop.permute.xlu0 %1152
        %1156 = vset.pattern.permute.xlu0 0
        %1157 = vperm.xlu0 %1156, %v986
        %v1158 = vpop.permute.xlu0 %1157
        %1161 = vset.pattern.permute.xlu0 0
        %1162 = vperm.xlu0 %1161, %v987
        %v1163 = vpop.permute.xlu0 %1162
        %1166 = vset.pattern.permute.xlu0 0
        %1167 = vperm.xlu0 %1166, %v988
        %v1168 = vpop.permute.xlu0 %1167
        %1171 = vset.pattern.permute.xlu0 0
        %1172 = vperm.xlu0 %1171, %v989
        %v1173 = vpop.permute.xlu0 %1172
        %1176 = vset.pattern.permute.xlu0 0
        %1177 = vperm.xlu0 %1176, %v990
        %v1178 = vpop.permute.xlu0 %1177
        %1181 = vset.pattern.permute.xlu0 0
        %1182 = vperm.xlu0 %1181, %v991
        %v1183 = vpop.permute.xlu0 %1182
        %v1185 = vsel %vm975, %v1108, %v1089
        %v1186 = vsel %vm975, %v1113, %v1090
        %v1187 = vsel %vm975, %v1118, %v1091
        %v1188 = vsel %vm975, %v1123, %v1092
        %v1189 = vsel %vm975, %v1128, %v1093
        %v1190 = vsel %vm975, %v1133, %v1094
        %v1191 = vsel %vm975, %v1138, %v1095
        %v1192 = vsel %vm975, %v1143, %v1096
        %v1193 = vsel %vm975, %v1148, %v1097
        %v1194 = vsel %vm975, %v1153, %v1098
        %v1195 = vsel %vm975, %v1158, %v1099
        %v1196 = vsel %vm975, %v1163, %v1100
        %v1197 = vsel %vm975, %v1168, %v1101
        %v1198 = vsel %vm975, %v1173, %v1102
        %v1199 = vsel %vm975, %v1178, %v1103
        %v1200 = vsel %vm975, %v1183, %v1104
        %v1201 = vsel %vm974, 1.0, %v1185
        %v1202 = vsel %vm974, 1.0, %v1186
        %v1203 = vsel %vm974, 1.0, %v1187
        %v1204 = vsel %vm974, 1.0, %v1188
        %v1205 = vsel %vm974, 1.0, %v1189
        %v1206 = vsel %vm974, 1.0, %v1190
        %v1207 = vsel %vm974, 1.0, %v1191
        %v1208 = vsel %vm974, 1.0, %v1192
        %v1209 = vsel %vm974, 1.0, %v1193
        %v1210 = vsel %vm974, 1.0, %v1194
        %v1211 = vsel %vm974, 1.0, %v1195
        %v1212 = vsel %vm974, 1.0, %v1196
        %v1213 = vsel %vm974, 1.0, %v1197
        %v1214 = vsel %vm974, 1.0, %v1198
        %v1215 = vsel %vm974, 1.0, %v1199
        %v1216 = vsel %vm974, 1.0, %v1200
        %v1217 = vld [vmem:[#allocation2] sm:$0xff]
        %v1218 = vld [vmem:[#allocation2 + $0x8] sm:$0xff]
        %v1219 = vld [vmem:[#allocation2 + $0x10] sm:$0xff]
        %v1220 = vld [vmem:[#allocation2 + $0x18] sm:$0xff]
        %v1221 = vld [vmem:[#allocation2 + $0x20] sm:$0xff]
        %v1222 = vld [vmem:[#allocation2 + $0x28] sm:$0xff]
        %v1223 = vld [vmem:[#allocation2 + $0x30] sm:$0xff]
        %v1224 = vld [vmem:[#allocation2 + $0x38] sm:$0xff]
        %v1225 = vld [vmem:[#allocation2 + $0x40] sm:$0xff]
        %v1226 = vld [vmem:[#allocation2 + $0x48] sm:$0xff]
        %v1227 = vld [vmem:[#allocation2 + $0x50] sm:$0xff]
        %v1228 = vld [vmem:[#allocation2 + $0x58] sm:$0xff]
        %v1229 = vld [vmem:[#allocation2 + $0x60] sm:$0xff]
        %v1230 = vld [vmem:[#allocation2 + $0x68] sm:$0xff]
        %v1231 = vld [vmem:[#allocation2 + $0x70] sm:$0xff]
        %v1232 = vld [vmem:[#allocation2 + $0x78] sm:$0xff]
        %1233 = vmatprep.subr.mxu0 0.0
        %v1234 = vand.u32 %v1216, 4294901760
        %1235 = vmatpush1.msra.mxu0 %v1234
        %1236 = vmatprep.subr.mxu0 0.0
        %v1237 = vand.u32 %v1215, 4294901760
        %1238 = vmatpush1.msra.mxu0 %v1237
        %1239 = vmatprep.subr.mxu0 0.0
        %v1240 = vand.u32 %v1214, 4294901760
        %1241 = vmatpush1.msra.mxu0 %v1240
        %1242 = vmatprep.subr.mxu0 0.0
        %v1243 = vand.u32 %v1213, 4294901760
        %1244 = vmatpush1.msra.mxu0 %v1243
        %1245 = vmatprep.subr.mxu0 0.0
        %v1246 = vand.u32 %v1212, 4294901760
        %1247 = vmatpush1.msra.mxu0 %v1246
        %1248 = vmatprep.subr.mxu0 0.0
        %v1249 = vand.u32 %v1211, 4294901760
        %1250 = vmatpush1.msra.mxu0 %v1249
        %1251 = vmatprep.subr.mxu0 0.0
        %v1252 = vand.u32 %v1210, 4294901760
        %1253 = vmatpush1.msra.mxu0 %v1252
        %1254 = vmatprep.subr.mxu0 0.0
        %v1255 = vand.u32 %v1209, 4294901760
        %1256 = vmatpush1.msra.mxu0 %v1255
        %1257 = vmatprep.subr.mxu0 0.0
        %v1258 = vand.u32 %v1208, 4294901760
        %1259 = vmatpush1.msra.mxu0 %v1258
        %1260 = vmatprep.subr.mxu0 0.0
        %v1261 = vand.u32 %v1207, 4294901760
        %1262 = vmatpush1.msra.mxu0 %v1261
        %1263 = vmatprep.subr.mxu0 0.0
        %v1264 = vand.u32 %v1206, 4294901760
        %1265 = vmatpush1.msra.mxu0 %v1264
        %1266 = vmatprep.subr.mxu0 0.0
        %v1267 = vand.u32 %v1205, 4294901760
        %1268 = vmatpush1.msra.mxu0 %v1267
        %1269 = vmatprep.subr.mxu0 0.0
        %v1270 = vand.u32 %v1204, 4294901760
        %1271 = vmatpush1.msra.mxu0 %v1270
        %1272 = vmatprep.subr.mxu0 0.0
        %v1273 = vand.u32 %v1203, 4294901760
        %1274 = vmatpush1.msra.mxu0 %v1273
        %1275 = vmatprep.subr.mxu0 0.0
        %v1276 = vand.u32 %v1202, 4294901760
        %1277 = vmatpush1.msra.mxu0 %v1276
        %1278 = vmatprep.subr.mxu0 0.0
        %v1279 = vand.u32 %v1201, 4294901760
        %1280 = vmatpush1.msra.mxu0 %v1279
        %1281 = vmatprep.subr.mxu0 0.0
        %1282 = vmatpush2.msra.mxu0 0.0
        %1283 = vmatprep.subr.mxu0 0.0
        %1284 = vmatpush2.msra.mxu0 0.0
        %1285 = vmatprep.subr.mxu0 0.0
        %1286 = vmatpush2.msra.mxu0 0.0
        %1287 = vmatprep.subr.mxu0 0.0
        %1288 = vmatpush2.msra.mxu0 0.0
        %1289 = vmatprep.subr.mxu0 0.0
        %1290 = vmatpush2.msra.mxu0 0.0
        %1291 = vmatprep.subr.mxu0 0.0
        %1292 = vmatpush2.msra.mxu0 0.0
        %1293 = vmatprep.subr.mxu0 0.0
        %1294 = vmatpush2.msra.mxu0 0.0
        %1295 = vmatprep.subr.mxu0 0.0
        %1296 = vmatpush2.msra.mxu0 0.0
        %1297 = vmatprep.subr.mxu0 0.0
        %1298 = vmatpush2.msra.mxu0 0.0
        %1299 = vmatprep.subr.mxu0 0.0
        %1300 = vmatpush2.msra.mxu0 0.0
        %1301 = vmatprep.subr.mxu0 0.0
        %1302 = vmatpush2.msra.mxu0 0.0
        %1303 = vmatprep.subr.mxu0 0.0
        %1304 = vmatpush2.msra.mxu0 0.0
        %1305 = vmatprep.subr.mxu0 0.0
        %1306 = vmatpush2.msra.mxu0 0.0
        %1307 = vmatprep.subr.mxu0 0.0
        %1308 = vmatpush2.msra.mxu0 0.0
        %1309 = vmatprep.subr.mxu0 0.0
        %1310 = vmatpush2.msra.mxu0 0.0
        %1311 = vmatprep.subr.mxu0 0.0
        %1312 = vmatpush2.msra.mxu0 0.0
        %1313 = vmatprep.mubr.f32.mxu0 0.0
        %v1314 = vand.u32 %v956, 4294901760
        %v1315 = vsub.f32 %v956, %v1314
        %v1316 = vand.u32 %v1315, 4294901760
        %v1317 = vsub.f32 %v1315, %v1316
        %v1318 = vand.u32 %v1317, 4294901760
        %1319 = vmatmul.mubr.f32.gmra.mxu0 %v1318
        %v1320 = vpop.f32.mrf.mxu0
        %v1321 = vadd.f32 0.0, %v1320
        %v1322 = vpop.f32.mrf.mxu0
        %1323 = vmatprep.mubr.f32.mxu0 0.0
        %v1324 = vand.u32 %v957, 4294901760
        %v1325 = vsub.f32 %v957, %v1324
        %v1326 = vand.u32 %v1325, 4294901760
        %v1327 = vsub.f32 %v1325, %v1326
        %v1328 = vand.u32 %v1327, 4294901760
        %1329 = vmatmul.mubr.f32.gmra.mxu0 %v1328
        %v1330 = vpop.f32.mrf.mxu0
        %v1331 = vadd.f32 0.0, %v1330
        %v1332 = vpop.f32.mrf.mxu0
        %1333 = vmatprep.mubr.f32.mxu0 0.0
        %v1334 = vand.u32 %v958, 4294901760
        %v1335 = vsub.f32 %v958, %v1334
        %v1336 = vand.u32 %v1335, 4294901760
        %v1337 = vsub.f32 %v1335, %v1336
        %v1338 = vand.u32 %v1337, 4294901760
        %1339 = vmatmul.mubr.f32.gmra.mxu0 %v1338
        %v1340 = vpop.f32.mrf.mxu0
        %v1341 = vadd.f32 0.0, %v1340
        %v1342 = vpop.f32.mrf.mxu0
        %1343 = vmatprep.mubr.f32.mxu0 0.0
        %v1344 = vand.u32 %v959, 4294901760
        %v1345 = vsub.f32 %v959, %v1344
        %v1346 = vand.u32 %v1345, 4294901760
        %v1347 = vsub.f32 %v1345, %v1346
        %v1348 = vand.u32 %v1347, 4294901760
        %1349 = vmatmul.mubr.f32.gmra.mxu0 %v1348
        %v1350 = vpop.f32.mrf.mxu0
        %v1351 = vadd.f32 0.0, %v1350
        %v1352 = vpop.f32.mrf.mxu0
        %1353 = vmatprep.mubr.f32.mxu0 0.0
        %v1354 = vand.u32 %v960, 4294901760
        %v1355 = vsub.f32 %v960, %v1354
        %v1356 = vand.u32 %v1355, 4294901760
        %v1357 = vsub.f32 %v1355, %v1356
        %v1358 = vand.u32 %v1357, 4294901760
        %1359 = vmatmul.mubr.f32.gmra.mxu0 %v1358
        %v1360 = vpop.f32.mrf.mxu0
        %v1361 = vadd.f32 0.0, %v1360
        %v1362 = vpop.f32.mrf.mxu0
        %1363 = vmatprep.mubr.f32.mxu0 0.0
        %v1364 = vand.u32 %v961, 4294901760
        %v1365 = vsub.f32 %v961, %v1364
        %v1366 = vand.u32 %v1365, 4294901760
        %v1367 = vsub.f32 %v1365, %v1366
        %v1368 = vand.u32 %v1367, 4294901760
        %1369 = vmatmul.mubr.f32.gmra.mxu0 %v1368
        %v1370 = vpop.f32.mrf.mxu0
        %v1371 = vadd.f32 0.0, %v1370
        %v1372 = vpop.f32.mrf.mxu0
        %1373 = vmatprep.mubr.f32.mxu0 0.0
        %v1374 = vand.u32 %v962, 4294901760
        %v1375 = vsub.f32 %v962, %v1374
        %v1376 = vand.u32 %v1375, 4294901760
        %v1377 = vsub.f32 %v1375, %v1376
        %v1378 = vand.u32 %v1377, 4294901760
        %1379 = vmatmul.mubr.f32.gmra.mxu0 %v1378
        %v1380 = vpop.f32.mrf.mxu0
        %v1381 = vadd.f32 0.0, %v1380
        %v1382 = vpop.f32.mrf.mxu0
        %1383 = vmatprep.mubr.f32.mxu0 0.0
        %v1384 = vand.u32 %v963, 4294901760
        %v1385 = vsub.f32 %v963, %v1384
        %v1386 = vand.u32 %v1385, 4294901760
        %v1387 = vsub.f32 %v1385, %v1386
        %v1388 = vand.u32 %v1387, 4294901760
        %1389 = vmatmul.mubr.f32.gmra.mxu0 %v1388
        %v1390 = vpop.f32.mrf.mxu0
        %v1391 = vadd.f32 0.0, %v1390
        %v1392 = vpop.f32.mrf.mxu0
        %1393 = vmatprep.mubr.f32.mxu0 0.0
        %v1394 = vand.u32 %v964, 4294901760
        %v1395 = vsub.f32 %v964, %v1394
        %v1396 = vand.u32 %v1395, 4294901760
        %v1397 = vsub.f32 %v1395, %v1396
        %v1398 = vand.u32 %v1397, 4294901760
        %1399 = vmatmul.mubr.f32.gmra.mxu0 %v1398
        %v1400 = vpop.f32.mrf.mxu0
        %v1401 = vadd.f32 0.0, %v1400
        %v1402 = vpop.f32.mrf.mxu0
        %1403 = vmatprep.mubr.f32.mxu0 0.0
        %v1404 = vand.u32 %v965, 4294901760
        %v1405 = vsub.f32 %v965, %v1404
        %v1406 = vand.u32 %v1405, 4294901760
        %v1407 = vsub.f32 %v1405, %v1406
        %v1408 = vand.u32 %v1407, 4294901760
        %1409 = vmatmul.mubr.f32.gmra.mxu0 %v1408
        %v1410 = vpop.f32.mrf.mxu0
        %v1411 = vadd.f32 0.0, %v1410
        %v1412 = vpop.f32.mrf.mxu0
        %1413 = vmatprep.mubr.f32.mxu0 0.0
        %v1414 = vand.u32 %v966, 4294901760
        %v1415 = vsub.f32 %v966, %v1414
        %v1416 = vand.u32 %v1415, 4294901760
        %v1417 = vsub.f32 %v1415, %v1416
        %v1418 = vand.u32 %v1417, 4294901760
        %1419 = vmatmul.mubr.f32.gmra.mxu0 %v1418
        %v1420 = vpop.f32.mrf.mxu0
        %v1421 = vadd.f32 0.0, %v1420
        %v1422 = vpop.f32.mrf.mxu0
        %1423 = vmatprep.mubr.f32.mxu0 0.0
        %v1424 = vand.u32 %v967, 4294901760
        %v1425 = vsub.f32 %v967, %v1424
        %v1426 = vand.u32 %v1425, 4294901760
        %v1427 = vsub.f32 %v1425, %v1426
        %v1428 = vand.u32 %v1427, 4294901760
        %1429 = vmatmul.mubr.f32.gmra.mxu0 %v1428
        %v1430 = vpop.f32.mrf.mxu0
        %v1431 = vadd.f32 0.0, %v1430
        %v1432 = vpop.f32.mrf.mxu0
        %1433 = vmatprep.mubr.f32.mxu0 0.0
        %v1434 = vand.u32 %v968, 4294901760
        %v1435 = vsub.f32 %v968, %v1434
        %v1436 = vand.u32 %v1435, 4294901760
        %v1437 = vsub.f32 %v1435, %v1436
        %v1438 = vand.u32 %v1437, 4294901760
        %1439 = vmatmul.mubr.f32.gmra.mxu0 %v1438
        %v1440 = vpop.f32.mrf.mxu0
        %v1441 = vadd.f32 0.0, %v1440
        %v1442 = vpop.f32.mrf.mxu0
        %1443 = vmatprep.mubr.f32.mxu0 0.0
        %v1444 = vand.u32 %v969, 4294901760
        %v1445 = vsub.f32 %v969, %v1444
        %v1446 = vand.u32 %v1445, 4294901760
        %v1447 = vsub.f32 %v1445, %v1446
        %v1448 = vand.u32 %v1447, 4294901760
        %1449 = vmatmul.mubr.f32.gmra.mxu0 %v1448
        %v1450 = vpop.f32.mrf.mxu0
        %v1451 = vadd.f32 0.0, %v1450
        %v1452 = vpop.f32.mrf.mxu0
        %1453 = vmatprep.mubr.f32.mxu0 0.0
        %v1454 = vand.u32 %v970, 4294901760
        %v1455 = vsub.f32 %v970, %v1454
        %v1456 = vand.u32 %v1455, 4294901760
        %v1457 = vsub.f32 %v1455, %v1456
        %v1458 = vand.u32 %v1457, 4294901760
        %1459 = vmatmul.mubr.f32.gmra.mxu0 %v1458
        %v1460 = vpop.f32.mrf.mxu0
        %v1461 = vadd.f32 0.0, %v1460
        %v1462 = vpop.f32.mrf.mxu0
        %1463 = vmatprep.mubr.f32.mxu0 0.0
        %v1464 = vand.u32 %v971, 4294901760
        %v1465 = vsub.f32 %v971, %v1464
        %v1466 = vand.u32 %v1465, 4294901760
        %v1467 = vsub.f32 %v1465, %v1466
        %v1468 = vand.u32 %v1467, 4294901760
        %1469 = vmatmul.mubr.f32.gmra.mxu0 %v1468
        %v1470 = vpop.f32.mrf.mxu0
        %v1471 = vadd.f32 0.0, %v1470
        %v1472 = vpop.f32.mrf.mxu0
        %1473 = vdwg.mxu0
        %1474 = vmatprep.subr.mxu0 0.0
        %v1475 = vand.u32 %v1216, 4294901760
        %v1476 = vsub.f32 %v1216, %v1475
        %v1477 = vand.u32 %v1476, 4294901760
        %v1478 = vsub.f32 %v1476, %v1477
        %v1479 = vand.u32 %v1478, 4294901760
        %1480 = vmatpush1.msra.mxu0 %v1479
        %1481 = vmatprep.subr.mxu0 0.0
        %v1482 = vand.u32 %v1215, 4294901760
        %v1483 = vsub.f32 %v1215, %v1482
        %v1484 = vand.u32 %v1483, 4294901760
        %v1485 = vsub.f32 %v1483, %v1484
        %v1486 = vand.u32 %v1485, 4294901760
        %1487 = vmatpush1.msra.mxu0 %v1486
        %1488 = vmatprep.subr.mxu0 0.0
        %v1489 = vand.u32 %v1214, 4294901760
        %v1490 = vsub.f32 %v1214, %v1489
        %v1491 = vand.u32 %v1490, 4294901760
        %v1492 = vsub.f32 %v1490, %v1491
        %v1493 = vand.u32 %v1492, 4294901760
        %1494 = vmatpush1.msra.mxu0 %v1493
        %1495 = vmatprep.subr.mxu0 0.0
        %v1496 = vand.u32 %v1213, 4294901760
        %v1497 = vsub.f32 %v1213, %v1496
        %v1498 = vand.u32 %v1497, 4294901760
        %v1499 = vsub.f32 %v1497, %v1498
        %v1500 = vand.u32 %v1499, 4294901760
        %1501 = vmatpush1.msra.mxu0 %v1500
        %1502 = vmatprep.subr.mxu0 0.0
        %v1503 = vand.u32 %v1212, 4294901760
        %v1504 = vsub.f32 %v1212, %v1503
        %v1505 = vand.u32 %v1504, 4294901760
        %v1506 = vsub.f32 %v1504, %v1505
        %v1507 = vand.u32 %v1506, 4294901760
        %1508 = vmatpush1.msra.mxu0 %v1507
        %1509 = vmatprep.subr.mxu0 0.0
        %v1510 = vand.u32 %v1211, 4294901760
        %v1511 = vsub.f32 %v1211, %v1510
        %v1512 = vand.u32 %v1511, 4294901760
        %v1513 = vsub.f32 %v1511, %v1512
        %v1514 = vand.u32 %v1513, 4294901760
        %1515 = vmatpush1.msra.mxu0 %v1514
        %1516 = vmatprep.subr.mxu0 0.0
        %v1517 = vand.u32 %v1210, 4294901760
        %v1518 = vsub.f32 %v1210, %v1517
        %v1519 = vand.u32 %v1518, 4294901760
        %v1520 = vsub.f32 %v1518, %v1519
        %v1521 = vand.u32 %v1520, 4294901760
        %1522 = vmatpush1.msra.mxu0 %v1521
        %1523 = vmatprep.subr.mxu0 0.0
        %v1524 = vand.u32 %v1209, 4294901760
        %v1525 = vsub.f32 %v1209, %v1524
        %v1526 = vand.u32 %v1525, 4294901760
        %v1527 = vsub.f32 %v1525, %v1526
        %v1528 = vand.u32 %v1527, 4294901760
        %1529 = vmatpush1.msra.mxu0 %v1528
        %1530 = vmatprep.subr.mxu0 0.0
        %v1531 = vand.u32 %v1208, 4294901760
        %v1532 = vsub.f32 %v1208, %v1531
        %v1533 = vand.u32 %v1532, 4294901760
        %v1534 = vsub.f32 %v1532, %v1533
        %v1535 = vand.u32 %v1534, 4294901760
        %1536 = vmatpush1.msra.mxu0 %v1535
        %1537 = vmatprep.subr.mxu0 0.0
        %v1538 = vand.u32 %v1207, 4294901760
        %v1539 = vsub.f32 %v1207, %v1538
        %v1540 = vand.u32 %v1539, 4294901760
        %v1541 = vsub.f32 %v1539, %v1540
        %v1542 = vand.u32 %v1541, 4294901760
        %1543 = vmatpush1.msra.mxu0 %v1542
        %1544 = vmatprep.subr.mxu0 0.0
        %v1545 = vand.u32 %v1206, 4294901760
        %v1546 = vsub.f32 %v1206, %v1545
        %v1547 = vand.u32 %v1546, 4294901760
        %v1548 = vsub.f32 %v1546, %v1547
        %v1549 = vand.u32 %v1548, 4294901760
        %1550 = vmatpush1.msra.mxu0 %v1549
        %1551 = vmatprep.subr.mxu0 0.0
        %v1552 = vand.u32 %v1205, 4294901760
        %v1553 = vsub.f32 %v1205, %v1552
        %v1554 = vand.u32 %v1553, 4294901760
        %v1555 = vsub.f32 %v1553, %v1554
        %v1556 = vand.u32 %v1555, 4294901760
        %1557 = vmatpush1.msra.mxu0 %v1556
        %1558 = vmatprep.subr.mxu0 0.0
        %v1559 = vand.u32 %v1204, 4294901760
        %v1560 = vsub.f32 %v1204, %v1559
        %v1561 = vand.u32 %v1560, 4294901760
        %v1562 = vsub.f32 %v1560, %v1561
        %v1563 = vand.u32 %v1562, 4294901760
        %1564 = vmatpush1.msra.mxu0 %v1563
        %1565 = vmatprep.subr.mxu0 0.0
        %v1566 = vand.u32 %v1203, 4294901760
        %v1567 = vsub.f32 %v1203, %v1566
        %v1568 = vand.u32 %v1567, 4294901760
        %v1569 = vsub.f32 %v1567, %v1568
        %v1570 = vand.u32 %v1569, 4294901760
        %1571 = vmatpush1.msra.mxu0 %v1570
        %1572 = vmatprep.subr.mxu0 0.0
        %v1573 = vand.u32 %v1202, 4294901760
        %v1574 = vsub.f32 %v1202, %v1573
        %v1575 = vand.u32 %v1574, 4294901760
        %v1576 = vsub.f32 %v1574, %v1575
        %v1577 = vand.u32 %v1576, 4294901760
        %1578 = vmatpush1.msra.mxu0 %v1577
        %1579 = vmatprep.subr.mxu0 0.0
        %v1580 = vand.u32 %v1201, 4294901760
        %v1581 = vsub.f32 %v1201, %v1580
        %v1582 = vand.u32 %v1581, 4294901760
        %v1583 = vsub.f32 %v1581, %v1582
        %v1584 = vand.u32 %v1583, 4294901760
        %1585 = vmatpush1.msra.mxu0 %v1584
        %1586 = vmatprep.subr.mxu0 0.0
        %1587 = vmatpush2.msra.mxu0 0.0
        %1588 = vmatprep.subr.mxu0 0.0
        %1589 = vmatpush2.msra.mxu0 0.0
        %1590 = vmatprep.subr.mxu0 0.0
        %1591 = vmatpush2.msra.mxu0 0.0
        %1592 = vmatprep.subr.mxu0 0.0
        %1593 = vmatpush2.msra.mxu0 0.0
        %1594 = vmatprep.subr.mxu0 0.0
        %1595 = vmatpush2.msra.mxu0 0.0
        %1596 = vmatprep.subr.mxu0 0.0
        %1597 = vmatpush2.msra.mxu0 0.0
        %1598 = vmatprep.subr.mxu0 0.0
        %1599 = vmatpush2.msra.mxu0 0.0
        %1600 = vmatprep.subr.mxu0 0.0
        %1601 = vmatpush2.msra.mxu0 0.0
        %1602 = vmatprep.subr.mxu0 0.0
        %1603 = vmatpush2.msra.mxu0 0.0
        %1604 = vmatprep.subr.mxu0 0.0
        %1605 = vmatpush2.msra.mxu0 0.0
        %1606 = vmatprep.subr.mxu0 0.0
        %1607 = vmatpush2.msra.mxu0 0.0
        %1608 = vmatprep.subr.mxu0 0.0
        %1609 = vmatpush2.msra.mxu0 0.0
        %1610 = vmatprep.subr.mxu0 0.0
        %1611 = vmatpush2.msra.mxu0 0.0
        %1612 = vmatprep.subr.mxu0 0.0
        %1613 = vmatpush2.msra.mxu0 0.0
        %1614 = vmatprep.subr.mxu0 0.0
        %1615 = vmatpush2.msra.mxu0 0.0
        %1616 = vmatprep.subr.mxu0 0.0
        %1617 = vmatpush2.msra.mxu0 0.0
        %1618 = vmatprep.mubr.f32.mxu0 0.0
        %v1619 = vand.u32 %v956, 4294901760
        %1620 = vmatmul.mubr.f32.gmra.mxu0 %v1619
        %v1621 = vpop.f32.mrf.mxu0
        %v1622 = vadd.f32 %v1321, %v1621
        %v1623 = vpop.f32.mrf.mxu0
        %1624 = vmatprep.mubr.f32.mxu0 0.0
        %v1625 = vand.u32 %v957, 4294901760
        %1626 = vmatmul.mubr.f32.gmra.mxu0 %v1625
        %v1627 = vpop.f32.mrf.mxu0
        %v1628 = vadd.f32 %v1331, %v1627
        %v1629 = vpop.f32.mrf.mxu0
        %1630 = vmatprep.mubr.f32.mxu0 0.0
        %v1631 = vand.u32 %v958, 4294901760
        %1632 = vmatmul.mubr.f32.gmra.mxu0 %v1631
        %v1633 = vpop.f32.mrf.mxu0
        %v1634 = vadd.f32 %v1341, %v1633
        %v1635 = vpop.f32.mrf.mxu0
        %1636 = vmatprep.mubr.f32.mxu0 0.0
        %v1637 = vand.u32 %v959, 4294901760
        %1638 = vmatmul.mubr.f32.gmra.mxu0 %v1637
        %v1639 = vpop.f32.mrf.mxu0
        %v1640 = vadd.f32 %v1351, %v1639
        %v1641 = vpop.f32.mrf.mxu0
        %1642 = vmatprep.mubr.f32.mxu0 0.0
        %v1643 = vand.u32 %v960, 4294901760
        %1644 = vmatmul.mubr.f32.gmra.mxu0 %v1643
        %v1645 = vpop.f32.mrf.mxu0
        %v1646 = vadd.f32 %v1361, %v1645
        %v1647 = vpop.f32.mrf.mxu0
        %1648 = vmatprep.mubr.f32.mxu0 0.0
        %v1649 = vand.u32 %v961, 4294901760
        %1650 = vmatmul.mubr.f32.gmra.mxu0 %v1649
        %v1651 = vpop.f32.mrf.mxu0
        %v1652 = vadd.f32 %v1371, %v1651
        %v1653 = vpop.f32.mrf.mxu0
        %1654 = vmatprep.mubr.f32.mxu0 0.0
        %v1655 = vand.u32 %v962, 4294901760
        %1656 = vmatmul.mubr.f32.gmra.mxu0 %v1655
        %v1657 = vpop.f32.mrf.mxu0
        %v1658 = vadd.f32 %v1381, %v1657
        %v1659 = vpop.f32.mrf.mxu0
        %1660 = vmatprep.mubr.f32.mxu0 0.0
        %v1661 = vand.u32 %v963, 4294901760
        %1662 = vmatmul.mubr.f32.gmra.mxu0 %v1661
        %v1663 = vpop.f32.mrf.mxu0
        %v1664 = vadd.f32 %v1391, %v1663
        %v1665 = vpop.f32.mrf.mxu0
        %1666 = vmatprep.mubr.f32.mxu0 0.0
        %v1667 = vand.u32 %v964, 4294901760
        %1668 = vmatmul.mubr.f32.gmra.mxu0 %v1667
        %v1669 = vpop.f32.mrf.mxu0
        %v1670 = vadd.f32 %v1401, %v1669
        %v1671 = vpop.f32.mrf.mxu0
        %1672 = vmatprep.mubr.f32.mxu0 0.0
        %v1673 = vand.u32 %v965, 4294901760
        %1674 = vmatmul.mubr.f32.gmra.mxu0 %v1673
        %v1675 = vpop.f32.mrf.mxu0
        %v1676 = vadd.f32 %v1411, %v1675
        %v1677 = vpop.f32.mrf.mxu0
        %1678 = vmatprep.mubr.f32.mxu0 0.0
        %v1679 = vand.u32 %v966, 4294901760
        %1680 = vmatmul.mubr.f32.gmra.mxu0 %v1679
        %v1681 = vpop.f32.mrf.mxu0
        %v1682 = vadd.f32 %v1421, %v1681
        %v1683 = vpop.f32.mrf.mxu0
        %1684 = vmatprep.mubr.f32.mxu0 0.0
        %v1685 = vand.u32 %v967, 4294901760
        %1686 = vmatmul.mubr.f32.gmra.mxu0 %v1685
        %v1687 = vpop.f32.mrf.mxu0
        %v1688 = vadd.f32 %v1431, %v1687
        %v1689 = vpop.f32.mrf.mxu0
        %1690 = vmatprep.mubr.f32.mxu0 0.0
        %v1691 = vand.u32 %v968, 4294901760
        %1692 = vmatmul.mubr.f32.gmra.mxu0 %v1691
        %v1693 = vpop.f32.mrf.mxu0
        %v1694 = vadd.f32 %v1441, %v1693
        %v1695 = vpop.f32.mrf.mxu0
        %1696 = vmatprep.mubr.f32.mxu0 0.0
        %v1697 = vand.u32 %v969, 4294901760
        %1698 = vmatmul.mubr.f32.gmra.mxu0 %v1697
        %v1699 = vpop.f32.mrf.mxu0
        %v1700 = vadd.f32 %v1451, %v1699
        %v1701 = vpop.f32.mrf.mxu0
        %1702 = vmatprep.mubr.f32.mxu0 0.0
        %v1703 = vand.u32 %v970, 4294901760
        %1704 = vmatmul.mubr.f32.gmra.mxu0 %v1703
        %v1705 = vpop.f32.mrf.mxu0
        %v1706 = vadd.f32 %v1461, %v1705
        %v1707 = vpop.f32.mrf.mxu0
        %1708 = vmatprep.mubr.f32.mxu0 0.0
        %v1709 = vand.u32 %v971, 4294901760
        %1710 = vmatmul.mubr.f32.gmra.mxu0 %v1709
        %v1711 = vpop.f32.mrf.mxu0
        %v1712 = vadd.f32 %v1471, %v1711
        %v1713 = vpop.f32.mrf.mxu0
        %1714 = vdwg.mxu0
        %1715 = vmatprep.subr.mxu0 0.0
        %v1716 = vand.u32 %v1216, 4294901760
        %v1717 = vsub.f32 %v1216, %v1716
        %1718 = vmatpush1.msra.mxu0 %v1717
        %1719 = vmatprep.subr.mxu0 0.0
        %v1720 = vand.u32 %v1215, 4294901760
        %v1721 = vsub.f32 %v1215, %v1720
        %1722 = vmatpush1.msra.mxu0 %v1721
        %1723 = vmatprep.subr.mxu0 0.0
        %v1724 = vand.u32 %v1214, 4294901760
        %v1725 = vsub.f32 %v1214, %v1724
        %1726 = vmatpush1.msra.mxu0 %v1725
        %1727 = vmatprep.subr.mxu0 0.0
        %v1728 = vand.u32 %v1213, 4294901760
        %v1729 = vsub.f32 %v1213, %v1728
        %1730 = vmatpush1.msra.mxu0 %v1729
        %1731 = vmatprep.subr.mxu0 0.0
        %v1732 = vand.u32 %v1212, 4294901760
        %v1733 = vsub.f32 %v1212, %v1732
        %1734 = vmatpush1.msra.mxu0 %v1733
        %1735 = vmatprep.subr.mxu0 0.0
        %v1736 = vand.u32 %v1211, 4294901760
        %v1737 = vsub.f32 %v1211, %v1736
        %1738 = vmatpush1.msra.mxu0 %v1737
        %1739 = vmatprep.subr.mxu0 0.0
        %v1740 = vand.u32 %v1210, 4294901760
        %v1741 = vsub.f32 %v1210, %v1740
        %1742 = vmatpush1.msra.mxu0 %v1741
        %1743 = vmatprep.subr.mxu0 0.0
        %v1744 = vand.u32 %v1209, 4294901760
        %v1745 = vsub.f32 %v1209, %v1744
        %1746 = vmatpush1.msra.mxu0 %v1745
        %1747 = vmatprep.subr.mxu0 0.0
        %v1748 = vand.u32 %v1208, 4294901760
        %v1749 = vsub.f32 %v1208, %v1748
        %1750 = vmatpush1.msra.mxu0 %v1749
        %1751 = vmatprep.subr.mxu0 0.0
        %v1752 = vand.u32 %v1207, 4294901760
        %v1753 = vsub.f32 %v1207, %v1752
        %1754 = vmatpush1.msra.mxu0 %v1753
        %1755 = vmatprep.subr.mxu0 0.0
        %v1756 = vand.u32 %v1206, 4294901760
        %v1757 = vsub.f32 %v1206, %v1756
        %1758 = vmatpush1.msra.mxu0 %v1757
        %1759 = vmatprep.subr.mxu0 0.0
        %v1760 = vand.u32 %v1205, 4294901760
        %v1761 = vsub.f32 %v1205, %v1760
        %1762 = vmatpush1.msra.mxu0 %v1761
        %1763 = vmatprep.subr.mxu0 0.0
        %v1764 = vand.u32 %v1204, 4294901760
        %v1765 = vsub.f32 %v1204, %v1764
        %1766 = vmatpush1.msra.mxu0 %v1765
        %1767 = vmatprep.subr.mxu0 0.0
        %v1768 = vand.u32 %v1203, 4294901760
        %v1769 = vsub.f32 %v1203, %v1768
        %1770 = vmatpush1.msra.mxu0 %v1769
        %1771 = vmatprep.subr.mxu0 0.0
        %v1772 = vand.u32 %v1202, 4294901760
        %v1773 = vsub.f32 %v1202, %v1772
        %1774 = vmatpush1.msra.mxu0 %v1773
        %1775 = vmatprep.subr.mxu0 0.0
        %v1776 = vand.u32 %v1201, 4294901760
        %v1777 = vsub.f32 %v1201, %v1776
        %1778 = vmatpush1.msra.mxu0 %v1777
        %1779 = vmatprep.subr.mxu0 0.0
        %1780 = vmatpush2.msra.mxu0 0.0
        %1781 = vmatprep.subr.mxu0 0.0
        %1782 = vmatpush2.msra.mxu0 0.0
        %1783 = vmatprep.subr.mxu0 0.0
        %1784 = vmatpush2.msra.mxu0 0.0
        %1785 = vmatprep.subr.mxu0 0.0
        %1786 = vmatpush2.msra.mxu0 0.0
        %1787 = vmatprep.subr.mxu0 0.0
        %1788 = vmatpush2.msra.mxu0 0.0
        %1789 = vmatprep.subr.mxu0 0.0
        %1790 = vmatpush2.msra.mxu0 0.0
        %1791 = vmatprep.subr.mxu0 0.0
        %1792 = vmatpush2.msra.mxu0 0.0
        %1793 = vmatprep.subr.mxu0 0.0
        %1794 = vmatpush2.msra.mxu0 0.0
        %1795 = vmatprep.subr.mxu0 0.0
        %1796 = vmatpush2.msra.mxu0 0.0
        %1797 = vmatprep.subr.mxu0 0.0
        %1798 = vmatpush2.msra.mxu0 0.0
        %1799 = vmatprep.subr.mxu0 0.0
        %1800 = vmatpush2.msra.mxu0 0.0
        %1801 = vmatprep.subr.mxu0 0.0
        %1802 = vmatpush2.msra.mxu0 0.0
        %1803 = vmatprep.subr.mxu0 0.0
        %1804 = vmatpush2.msra.mxu0 0.0
        %1805 = vmatprep.subr.mxu0 0.0
        %1806 = vmatpush2.msra.mxu0 0.0
        %1807 = vmatprep.subr.mxu0 0.0
        %1808 = vmatpush2.msra.mxu0 0.0
        %1809 = vmatprep.subr.mxu0 0.0
        %1810 = vmatpush2.msra.mxu0 0.0
        %1811 = vmatprep.mubr.f32.mxu0 0.0
        %v1812 = vand.u32 %v956, 4294901760
        %v1813 = vsub.f32 %v956, %v1812
        %1814 = vmatmul.mubr.f32.gmra.mxu0 %v1813
        %v1815 = vpop.f32.mrf.mxu0
        %v1816 = vadd.f32 %v1622, %v1815
        %v1817 = vpop.f32.mrf.mxu0
        %1818 = vmatprep.mubr.f32.mxu0 0.0
        %v1819 = vand.u32 %v957, 4294901760
        %v1820 = vsub.f32 %v957, %v1819
        %1821 = vmatmul.mubr.f32.gmra.mxu0 %v1820
        %v1822 = vpop.f32.mrf.mxu0
        %v1823 = vadd.f32 %v1628, %v1822
        %v1824 = vpop.f32.mrf.mxu0
        %1825 = vmatprep.mubr.f32.mxu0 0.0
        %v1826 = vand.u32 %v958, 4294901760
        %v1827 = vsub.f32 %v958, %v1826
        %1828 = vmatmul.mubr.f32.gmra.mxu0 %v1827
        %v1829 = vpop.f32.mrf.mxu0
        %v1830 = vadd.f32 %v1634, %v1829
        %v1831 = vpop.f32.mrf.mxu0
        %1832 = vmatprep.mubr.f32.mxu0 0.0
        %v1833 = vand.u32 %v959, 4294901760
        %v1834 = vsub.f32 %v959, %v1833
        %1835 = vmatmul.mubr.f32.gmra.mxu0 %v1834
        %v1836 = vpop.f32.mrf.mxu0
        %v1837 = vadd.f32 %v1640, %v1836
        %v1838 = vpop.f32.mrf.mxu0
        %1839 = vmatprep.mubr.f32.mxu0 0.0
        %v1840 = vand.u32 %v960, 4294901760
        %v1841 = vsub.f32 %v960, %v1840
        %1842 = vmatmul.mubr.f32.gmra.mxu0 %v1841
        %v1843 = vpop.f32.mrf.mxu0
        %v1844 = vadd.f32 %v1646, %v1843
        %v1845 = vpop.f32.mrf.mxu0
        %1846 = vmatprep.mubr.f32.mxu0 0.0
        %v1847 = vand.u32 %v961, 4294901760
        %v1848 = vsub.f32 %v961, %v1847
        %1849 = vmatmul.mubr.f32.gmra.mxu0 %v1848
        %v1850 = vpop.f32.mrf.mxu0
        %v1851 = vadd.f32 %v1652, %v1850
        %v1852 = vpop.f32.mrf.mxu0
        %1853 = vmatprep.mubr.f32.mxu0 0.0
        %v1854 = vand.u32 %v962, 4294901760
        %v1855 = vsub.f32 %v962, %v1854
        %1856 = vmatmul.mubr.f32.gmra.mxu0 %v1855
        %v1857 = vpop.f32.mrf.mxu0
        %v1858 = vadd.f32 %v1658, %v1857
        %v1859 = vpop.f32.mrf.mxu0
        %1860 = vmatprep.mubr.f32.mxu0 0.0
        %v1861 = vand.u32 %v963, 4294901760
        %v1862 = vsub.f32 %v963, %v1861
        %1863 = vmatmul.mubr.f32.gmra.mxu0 %v1862
        %v1864 = vpop.f32.mrf.mxu0
        %v1865 = vadd.f32 %v1664, %v1864
        %v1866 = vpop.f32.mrf.mxu0
        %1867 = vmatprep.mubr.f32.mxu0 0.0
        %v1868 = vand.u32 %v964, 4294901760
        %v1869 = vsub.f32 %v964, %v1868
        %1870 = vmatmul.mubr.f32.gmra.mxu0 %v1869
        %v1871 = vpop.f32.mrf.mxu0
        %v1872 = vadd.f32 %v1670, %v1871
        %v1873 = vpop.f32.mrf.mxu0
        %1874 = vmatprep.mubr.f32.mxu0 0.0
        %v1875 = vand.u32 %v965, 4294901760
        %v1876 = vsub.f32 %v965, %v1875
        %1877 = vmatmul.mubr.f32.gmra.mxu0 %v1876
        %v1878 = vpop.f32.mrf.mxu0
        %v1879 = vadd.f32 %v1676, %v1878
        %v1880 = vpop.f32.mrf.mxu0
        %1881 = vmatprep.mubr.f32.mxu0 0.0
        %v1882 = vand.u32 %v966, 4294901760
        %v1883 = vsub.f32 %v966, %v1882
        %1884 = vmatmul.mubr.f32.gmra.mxu0 %v1883
        %v1885 = vpop.f32.mrf.mxu0
        %v1886 = vadd.f32 %v1682, %v1885
        %v1887 = vpop.f32.mrf.mxu0
        %1888 = vmatprep.mubr.f32.mxu0 0.0
        %v1889 = vand.u32 %v967, 4294901760
        %v1890 = vsub.f32 %v967, %v1889
        %1891 = vmatmul.mubr.f32.gmra.mxu0 %v1890
        %v1892 = vpop.f32.mrf.mxu0
        %v1893 = vadd.f32 %v1688, %v1892
        %v1894 = vpop.f32.mrf.mxu0
        %1895 = vmatprep.mubr.f32.mxu0 0.0
        %v1896 = vand.u32 %v968, 4294901760
        %v1897 = vsub.f32 %v968, %v1896
        %1898 = vmatmul.mubr.f32.gmra.mxu0 %v1897
        %v1899 = vpop.f32.mrf.mxu0
        %v1900 = vadd.f32 %v1694, %v1899
        %v1901 = vpop.f32.mrf.mxu0
        %1902 = vmatprep.mubr.f32.mxu0 0.0
        %v1903 = vand.u32 %v969, 4294901760
        %v1904 = vsub.f32 %v969, %v1903
        %1905 = vmatmul.mubr.f32.gmra.mxu0 %v1904
        %v1906 = vpop.f32.mrf.mxu0
        %v1907 = vadd.f32 %v1700, %v1906
        %v1908 = vpop.f32.mrf.mxu0
        %1909 = vmatprep.mubr.f32.mxu0 0.0
        %v1910 = vand.u32 %v970, 4294901760
        %v1911 = vsub.f32 %v970, %v1910
        %1912 = vmatmul.mubr.f32.gmra.mxu0 %v1911
        %v1913 = vpop.f32.mrf.mxu0
        %v1914 = vadd.f32 %v1706, %v1913
        %v1915 = vpop.f32.mrf.mxu0
        %1916 = vmatprep.mubr.f32.mxu0 0.0
        %v1917 = vand.u32 %v971, 4294901760
        %v1918 = vsub.f32 %v971, %v1917
        %1919 = vmatmul.mubr.f32.gmra.mxu0 %v1918
        %v1920 = vpop.f32.mrf.mxu0
        %v1921 = vadd.f32 %v1712, %v1920
        %v1922 = vpop.f32.mrf.mxu0
        %1923 = vdwg.mxu0
        %1924 = vmatprep.subr.mxu0 0.0
        %v1925 = vand.u32 %v1216, 4294901760
        %1926 = vmatpush1.msra.mxu0 %v1925
        %1927 = vmatprep.subr.mxu0 0.0
        %v1928 = vand.u32 %v1215, 4294901760
        %1929 = vmatpush1.msra.mxu0 %v1928
        %1930 = vmatprep.subr.mxu0 0.0
        %v1931 = vand.u32 %v1214, 4294901760
        %1932 = vmatpush1.msra.mxu0 %v1931
        %1933 = vmatprep.subr.mxu0 0.0
        %v1934 = vand.u32 %v1213, 4294901760
        %1935 = vmatpush1.msra.mxu0 %v1934
        %1936 = vmatprep.subr.mxu0 0.0
        %v1937 = vand.u32 %v1212, 4294901760
        %1938 = vmatpush1.msra.mxu0 %v1937
        %1939 = vmatprep.subr.mxu0 0.0
        %v1940 = vand.u32 %v1211, 4294901760
        %1941 = vmatpush1.msra.mxu0 %v1940
        %1942 = vmatprep.subr.mxu0 0.0
        %v1943 = vand.u32 %v1210, 4294901760
        %1944 = vmatpush1.msra.mxu0 %v1943
        %1945 = vmatprep.subr.mxu0 0.0
        %v1946 = vand.u32 %v1209, 4294901760
        %1947 = vmatpush1.msra.mxu0 %v1946
        %1948 = vmatprep.subr.mxu0 0.0
        %v1949 = vand.u32 %v1208, 4294901760
        %1950 = vmatpush1.msra.mxu0 %v1949
        %1951 = vmatprep.subr.mxu0 0.0
        %v1952 = vand.u32 %v1207, 4294901760
        %1953 = vmatpush1.msra.mxu0 %v1952
        %1954 = vmatprep.subr.mxu0 0.0
        %v1955 = vand.u32 %v1206, 4294901760
        %1956 = vmatpush1.msra.mxu0 %v1955
        %1957 = vmatprep.subr.mxu0 0.0
        %v1958 = vand.u32 %v1205, 4294901760
        %1959 = vmatpush1.msra.mxu0 %v1958
        %1960 = vmatprep.subr.mxu0 0.0
        %v1961 = vand.u32 %v1204, 4294901760
        %1962 = vmatpush1.msra.mxu0 %v1961
        %1963 = vmatprep.subr.mxu0 0.0
        %v1964 = vand.u32 %v1203, 4294901760
        %1965 = vmatpush1.msra.mxu0 %v1964
        %1966 = vmatprep.subr.mxu0 0.0
        %v1967 = vand.u32 %v1202, 4294901760
        %1968 = vmatpush1.msra.mxu0 %v1967
        %1969 = vmatprep.subr.mxu0 0.0
        %v1970 = vand.u32 %v1201, 4294901760
        %1971 = vmatpush1.msra.mxu0 %v1970
        %1972 = vmatprep.subr.mxu0 0.0
        %1973 = vmatpush2.msra.mxu0 0.0
        %1974 = vmatprep.subr.mxu0 0.0
        %1975 = vmatpush2.msra.mxu0 0.0
        %1976 = vmatprep.subr.mxu0 0.0
        %1977 = vmatpush2.msra.mxu0 0.0
        %1978 = vmatprep.subr.mxu0 0.0
        %1979 = vmatpush2.msra.mxu0 0.0
        %1980 = vmatprep.subr.mxu0 0.0
        %1981 = vmatpush2.msra.mxu0 0.0
        %1982 = vmatprep.subr.mxu0 0.0
        %1983 = vmatpush2.msra.mxu0 0.0
        %1984 = vmatprep.subr.mxu0 0.0
        %1985 = vmatpush2.msra.mxu0 0.0
        %1986 = vmatprep.subr.mxu0 0.0
        %1987 = vmatpush2.msra.mxu0 0.0
        %1988 = vmatprep.subr.mxu0 0.0
        %1989 = vmatpush2.msra.mxu0 0.0
        %1990 = vmatprep.subr.mxu0 0.0
        %1991 = vmatpush2.msra.mxu0 0.0
        %1992 = vmatprep.subr.mxu0 0.0
        %1993 = vmatpush2.msra.mxu0 0.0
        %1994 = vmatprep.subr.mxu0 0.0
        %1995 = vmatpush2.msra.mxu0 0.0
        %1996 = vmatprep.subr.mxu0 0.0
        %1997 = vmatpush2.msra.mxu0 0.0
        %1998 = vmatprep.subr.mxu0 0.0
        %1999 = vmatpush2.msra.mxu0 0.0
        %2000 = vmatprep.subr.mxu0 0.0
        %2001 = vmatpush2.msra.mxu0 0.0
        %2002 = vmatprep.subr.mxu0 0.0
        %2003 = vmatpush2.msra.mxu0 0.0
        %2004 = vmatprep.mubr.f32.mxu0 0.0
        %v2005 = vand.u32 %v956, 4294901760
        %v2006 = vsub.f32 %v956, %v2005
        %v2007 = vand.u32 %v2006, 4294901760
        %2008 = vmatmul.mubr.f32.gmra.mxu0 %v2007
        %v2009 = vpop.f32.mrf.mxu0
        %v2010 = vadd.f32 %v1816, %v2009
        %v2011 = vpop.f32.mrf.mxu0
        %2012 = vmatprep.mubr.f32.mxu0 0.0
        %v2013 = vand.u32 %v957, 4294901760
        %v2014 = vsub.f32 %v957, %v2013
        %v2015 = vand.u32 %v2014, 4294901760
        %2016 = vmatmul.mubr.f32.gmra.mxu0 %v2015
        %v2017 = vpop.f32.mrf.mxu0
        %v2018 = vadd.f32 %v1823, %v2017
        %v2019 = vpop.f32.mrf.mxu0
        %2020 = vmatprep.mubr.f32.mxu0 0.0
        %v2021 = vand.u32 %v958, 4294901760
        %v2022 = vsub.f32 %v958, %v2021
        %v2023 = vand.u32 %v2022, 4294901760
        %2024 = vmatmul.mubr.f32.gmra.mxu0 %v2023
        %v2025 = vpop.f32.mrf.mxu0
        %v2026 = vadd.f32 %v1830, %v2025
        %v2027 = vpop.f32.mrf.mxu0
        %2028 = vmatprep.mubr.f32.mxu0 0.0
        %v2029 = vand.u32 %v959, 4294901760
        %v2030 = vsub.f32 %v959, %v2029
        %v2031 = vand.u32 %v2030, 4294901760
        %2032 = vmatmul.mubr.f32.gmra.mxu0 %v2031
        %v2033 = vpop.f32.mrf.mxu0
        %v2034 = vadd.f32 %v1837, %v2033
        %v2035 = vpop.f32.mrf.mxu0
        %2036 = vmatprep.mubr.f32.mxu0 0.0
        %v2037 = vand.u32 %v960, 4294901760
        %v2038 = vsub.f32 %v960, %v2037
        %v2039 = vand.u32 %v2038, 4294901760
        %2040 = vmatmul.mubr.f32.gmra.mxu0 %v2039
        %v2041 = vpop.f32.mrf.mxu0
        %v2042 = vadd.f32 %v1844, %v2041
        %v2043 = vpop.f32.mrf.mxu0
        %2044 = vmatprep.mubr.f32.mxu0 0.0
        %v2045 = vand.u32 %v961, 4294901760
        %v2046 = vsub.f32 %v961, %v2045
        %v2047 = vand.u32 %v2046, 4294901760
        %2048 = vmatmul.mubr.f32.gmra.mxu0 %v2047
        %v2049 = vpop.f32.mrf.mxu0
        %v2050 = vadd.f32 %v1851, %v2049
        %v2051 = vpop.f32.mrf.mxu0
        %2052 = vmatprep.mubr.f32.mxu0 0.0
        %v2053 = vand.u32 %v962, 4294901760
        %v2054 = vsub.f32 %v962, %v2053
        %v2055 = vand.u32 %v2054, 4294901760
        %2056 = vmatmul.mubr.f32.gmra.mxu0 %v2055
        %v2057 = vpop.f32.mrf.mxu0
        %v2058 = vadd.f32 %v1858, %v2057
        %v2059 = vpop.f32.mrf.mxu0
        %2060 = vmatprep.mubr.f32.mxu0 0.0
        %v2061 = vand.u32 %v963, 4294901760
        %v2062 = vsub.f32 %v963, %v2061
        %v2063 = vand.u32 %v2062, 4294901760
        %2064 = vmatmul.mubr.f32.gmra.mxu0 %v2063
        %v2065 = vpop.f32.mrf.mxu0
        %v2066 = vadd.f32 %v1865, %v2065
        %v2067 = vpop.f32.mrf.mxu0
        %2068 = vmatprep.mubr.f32.mxu0 0.0
        %v2069 = vand.u32 %v964, 4294901760
        %v2070 = vsub.f32 %v964, %v2069
        %v2071 = vand.u32 %v2070, 4294901760
        %2072 = vmatmul.mubr.f32.gmra.mxu0 %v2071
        %v2073 = vpop.f32.mrf.mxu0
        %v2074 = vadd.f32 %v1872, %v2073
        %v2075 = vpop.f32.mrf.mxu0
        %2076 = vmatprep.mubr.f32.mxu0 0.0
        %v2077 = vand.u32 %v965, 4294901760
        %v2078 = vsub.f32 %v965, %v2077
        %v2079 = vand.u32 %v2078, 4294901760
        %2080 = vmatmul.mubr.f32.gmra.mxu0 %v2079
        %v2081 = vpop.f32.mrf.mxu0
        %v2082 = vadd.f32 %v1879, %v2081
        %v2083 = vpop.f32.mrf.mxu0
        %2084 = vmatprep.mubr.f32.mxu0 0.0
        %v2085 = vand.u32 %v966, 4294901760
        %v2086 = vsub.f32 %v966, %v2085
        %v2087 = vand.u32 %v2086, 4294901760
        %2088 = vmatmul.mubr.f32.gmra.mxu0 %v2087
        %v2089 = vpop.f32.mrf.mxu0
        %v2090 = vadd.f32 %v1886, %v2089
        %v2091 = vpop.f32.mrf.mxu0
        %2092 = vmatprep.mubr.f32.mxu0 0.0
        %v2093 = vand.u32 %v967, 4294901760
        %v2094 = vsub.f32 %v967, %v2093
        %v2095 = vand.u32 %v2094, 4294901760
        %2096 = vmatmul.mubr.f32.gmra.mxu0 %v2095
        %v2097 = vpop.f32.mrf.mxu0
        %v2098 = vadd.f32 %v1893, %v2097
        %v2099 = vpop.f32.mrf.mxu0
        %2100 = vmatprep.mubr.f32.mxu0 0.0
        %v2101 = vand.u32 %v968, 4294901760
        %v2102 = vsub.f32 %v968, %v2101
        %v2103 = vand.u32 %v2102, 4294901760
        %2104 = vmatmul.mubr.f32.gmra.mxu0 %v2103
        %v2105 = vpop.f32.mrf.mxu0
        %v2106 = vadd.f32 %v1900, %v2105
        %v2107 = vpop.f32.mrf.mxu0
        %2108 = vmatprep.mubr.f32.mxu0 0.0
        %v2109 = vand.u32 %v969, 4294901760
        %v2110 = vsub.f32 %v969, %v2109
        %v2111 = vand.u32 %v2110, 4294901760
        %2112 = vmatmul.mubr.f32.gmra.mxu0 %v2111
        %v2113 = vpop.f32.mrf.mxu0
        %v2114 = vadd.f32 %v1907, %v2113
        %v2115 = vpop.f32.mrf.mxu0
        %2116 = vmatprep.mubr.f32.mxu0 0.0
        %v2117 = vand.u32 %v970, 4294901760
        %v2118 = vsub.f32 %v970, %v2117
        %v2119 = vand.u32 %v2118, 4294901760
        %2120 = vmatmul.mubr.f32.gmra.mxu0 %v2119
        %v2121 = vpop.f32.mrf.mxu0
        %v2122 = vadd.f32 %v1914, %v2121
        %v2123 = vpop.f32.mrf.mxu0
        %2124 = vmatprep.mubr.f32.mxu0 0.0
        %v2125 = vand.u32 %v971, 4294901760
        %v2126 = vsub.f32 %v971, %v2125
        %v2127 = vand.u32 %v2126, 4294901760
        %2128 = vmatmul.mubr.f32.gmra.mxu0 %v2127
        %v2129 = vpop.f32.mrf.mxu0
        %v2130 = vadd.f32 %v1921, %v2129
        %v2131 = vpop.f32.mrf.mxu0
        %2132 = vdwg.mxu0
        %2133 = vmatprep.subr.mxu0 0.0
        %v2134 = vand.u32 %v1216, 4294901760
        %v2135 = vsub.f32 %v1216, %v2134
        %v2136 = vand.u32 %v2135, 4294901760
        %2137 = vmatpush1.msra.mxu0 %v2136
        %2138 = vmatprep.subr.mxu0 0.0
        %v2139 = vand.u32 %v1215, 4294901760
        %v2140 = vsub.f32 %v1215, %v2139
        %v2141 = vand.u32 %v2140, 4294901760
        %2142 = vmatpush1.msra.mxu0 %v2141
        %2143 = vmatprep.subr.mxu0 0.0
        %v2144 = vand.u32 %v1214, 4294901760
        %v2145 = vsub.f32 %v1214, %v2144
        %v2146 = vand.u32 %v2145, 4294901760
        %2147 = vmatpush1.msra.mxu0 %v2146
        %2148 = vmatprep.subr.mxu0 0.0
        %v2149 = vand.u32 %v1213, 4294901760
        %v2150 = vsub.f32 %v1213, %v2149
        %v2151 = vand.u32 %v2150, 4294901760
        %2152 = vmatpush1.msra.mxu0 %v2151
        %2153 = vmatprep.subr.mxu0 0.0
        %v2154 = vand.u32 %v1212, 4294901760
        %v2155 = vsub.f32 %v1212, %v2154
        %v2156 = vand.u32 %v2155, 4294901760
        %2157 = vmatpush1.msra.mxu0 %v2156
        %2158 = vmatprep.subr.mxu0 0.0
        %v2159 = vand.u32 %v1211, 4294901760
        %v2160 = vsub.f32 %v1211, %v2159
        %v2161 = vand.u32 %v2160, 4294901760
        %2162 = vmatpush1.msra.mxu0 %v2161
        %2163 = vmatprep.subr.mxu0 0.0
        %v2164 = vand.u32 %v1210, 4294901760
        %v2165 = vsub.f32 %v1210, %v2164
        %v2166 = vand.u32 %v2165, 4294901760
        %2167 = vmatpush1.msra.mxu0 %v2166
        %2168 = vmatprep.subr.mxu0 0.0
        %v2169 = vand.u32 %v1209, 4294901760
        %v2170 = vsub.f32 %v1209, %v2169
        %v2171 = vand.u32 %v2170, 4294901760
        %2172 = vmatpush1.msra.mxu0 %v2171
        %2173 = vmatprep.subr.mxu0 0.0
        %v2174 = vand.u32 %v1208, 4294901760
        %v2175 = vsub.f32 %v1208, %v2174
        %v2176 = vand.u32 %v2175, 4294901760
        %2177 = vmatpush1.msra.mxu0 %v2176
        %2178 = vmatprep.subr.mxu0 0.0
        %v2179 = vand.u32 %v1207, 4294901760
        %v2180 = vsub.f32 %v1207, %v2179
        %v2181 = vand.u32 %v2180, 4294901760
        %2182 = vmatpush1.msra.mxu0 %v2181
        %2183 = vmatprep.subr.mxu0 0.0
        %v2184 = vand.u32 %v1206, 4294901760
        %v2185 = vsub.f32 %v1206, %v2184
        %v2186 = vand.u32 %v2185, 4294901760
        %2187 = vmatpush1.msra.mxu0 %v2186
        %2188 = vmatprep.subr.mxu0 0.0
        %v2189 = vand.u32 %v1205, 4294901760
        %v2190 = vsub.f32 %v1205, %v2189
        %v2191 = vand.u32 %v2190, 4294901760
        %2192 = vmatpush1.msra.mxu0 %v2191
        %2193 = vmatprep.subr.mxu0 0.0
        %v2194 = vand.u32 %v1204, 4294901760
        %v2195 = vsub.f32 %v1204, %v2194
        %v2196 = vand.u32 %v2195, 4294901760
        %2197 = vmatpush1.msra.mxu0 %v2196
        %2198 = vmatprep.subr.mxu0 0.0
        %v2199 = vand.u32 %v1203, 4294901760
        %v2200 = vsub.f32 %v1203, %v2199
        %v2201 = vand.u32 %v2200, 4294901760
        %2202 = vmatpush1.msra.mxu0 %v2201
        %2203 = vmatprep.subr.mxu0 0.0
        %v2204 = vand.u32 %v1202, 4294901760
        %v2205 = vsub.f32 %v1202, %v2204
        %v2206 = vand.u32 %v2205, 4294901760
        %2207 = vmatpush1.msra.mxu0 %v2206
        %2208 = vmatprep.subr.mxu0 0.0
        %v2209 = vand.u32 %v1201, 4294901760
        %v2210 = vsub.f32 %v1201, %v2209
        %v2211 = vand.u32 %v2210, 4294901760
        %2212 = vmatpush1.msra.mxu0 %v2211
        %2213 = vmatprep.subr.mxu0 0.0
        %2214 = vmatpush2.msra.mxu0 0.0
        %2215 = vmatprep.subr.mxu0 0.0
        %2216 = vmatpush2.msra.mxu0 0.0
        %2217 = vmatprep.subr.mxu0 0.0
        %2218 = vmatpush2.msra.mxu0 0.0
        %2219 = vmatprep.subr.mxu0 0.0
        %2220 = vmatpush2.msra.mxu0 0.0
        %2221 = vmatprep.subr.mxu0 0.0
        %2222 = vmatpush2.msra.mxu0 0.0
        %2223 = vmatprep.subr.mxu0 0.0
        %2224 = vmatpush2.msra.mxu0 0.0
        %2225 = vmatprep.subr.mxu0 0.0
        %2226 = vmatpush2.msra.mxu0 0.0
        %2227 = vmatprep.subr.mxu0 0.0
        %2228 = vmatpush2.msra.mxu0 0.0
        %2229 = vmatprep.subr.mxu0 0.0
        %2230 = vmatpush2.msra.mxu0 0.0
        %2231 = vmatprep.subr.mxu0 0.0
        %2232 = vmatpush2.msra.mxu0 0.0
        %2233 = vmatprep.subr.mxu0 0.0
        %2234 = vmatpush2.msra.mxu0 0.0
        %2235 = vmatprep.subr.mxu0 0.0
        %2236 = vmatpush2.msra.mxu0 0.0
        %2237 = vmatprep.subr.mxu0 0.0
        %2238 = vmatpush2.msra.mxu0 0.0
        %2239 = vmatprep.subr.mxu0 0.0
        %2240 = vmatpush2.msra.mxu0 0.0
        %2241 = vmatprep.subr.mxu0 0.0
        %2242 = vmatpush2.msra.mxu0 0.0
        %2243 = vmatprep.subr.mxu0 0.0
        %2244 = vmatpush2.msra.mxu0 0.0
        %2245 = vmatprep.mubr.f32.mxu0 0.0
        %v2246 = vand.u32 %v956, 4294901760
        %2247 = vmatmul.mubr.f32.gmra.mxu0 %v2246
        %v2248 = vpop.f32.mrf.mxu0
        %v2249 = vadd.f32 %v2010, %v2248
        %v2250 = vpop.f32.mrf.mxu0
        %2251 = vmatprep.mubr.f32.mxu0 0.0
        %v2252 = vand.u32 %v957, 4294901760
        %2253 = vmatmul.mubr.f32.gmra.mxu0 %v2252
        %v2254 = vpop.f32.mrf.mxu0
        %v2255 = vadd.f32 %v2018, %v2254
        %v2256 = vpop.f32.mrf.mxu0
        %2257 = vmatprep.mubr.f32.mxu0 0.0
        %v2258 = vand.u32 %v958, 4294901760
        %2259 = vmatmul.mubr.f32.gmra.mxu0 %v2258
        %v2260 = vpop.f32.mrf.mxu0
        %v2261 = vadd.f32 %v2026, %v2260
        %v2262 = vpop.f32.mrf.mxu0
        %2263 = vmatprep.mubr.f32.mxu0 0.0
        %v2264 = vand.u32 %v959, 4294901760
        %2265 = vmatmul.mubr.f32.gmra.mxu0 %v2264
        %v2266 = vpop.f32.mrf.mxu0
        %v2267 = vadd.f32 %v2034, %v2266
        %v2268 = vpop.f32.mrf.mxu0
        %2269 = vmatprep.mubr.f32.mxu0 0.0
        %v2270 = vand.u32 %v960, 4294901760
        %2271 = vmatmul.mubr.f32.gmra.mxu0 %v2270
        %v2272 = vpop.f32.mrf.mxu0
        %v2273 = vadd.f32 %v2042, %v2272
        %v2274 = vpop.f32.mrf.mxu0
        %2275 = vmatprep.mubr.f32.mxu0 0.0
        %v2276 = vand.u32 %v961, 4294901760
        %2277 = vmatmul.mubr.f32.gmra.mxu0 %v2276
        %v2278 = vpop.f32.mrf.mxu0
        %v2279 = vadd.f32 %v2050, %v2278
        %v2280 = vpop.f32.mrf.mxu0
        %2281 = vmatprep.mubr.f32.mxu0 0.0
        %v2282 = vand.u32 %v962, 4294901760
        %2283 = vmatmul.mubr.f32.gmra.mxu0 %v2282
        %v2284 = vpop.f32.mrf.mxu0
        %v2285 = vadd.f32 %v2058, %v2284
        %v2286 = vpop.f32.mrf.mxu0
        %2287 = vmatprep.mubr.f32.mxu0 0.0
        %v2288 = vand.u32 %v963, 4294901760
        %2289 = vmatmul.mubr.f32.gmra.mxu0 %v2288
        %v2290 = vpop.f32.mrf.mxu0
        %v2291 = vadd.f32 %v2066, %v2290
        %v2292 = vpop.f32.mrf.mxu0
        %2293 = vmatprep.mubr.f32.mxu0 0.0
        %v2294 = vand.u32 %v964, 4294901760
        %2295 = vmatmul.mubr.f32.gmra.mxu0 %v2294
        %v2296 = vpop.f32.mrf.mxu0
        %v2297 = vadd.f32 %v2074, %v2296
        %v2298 = vpop.f32.mrf.mxu0
        %2299 = vmatprep.mubr.f32.mxu0 0.0
        %v2300 = vand.u32 %v965, 4294901760
        %2301 = vmatmul.mubr.f32.gmra.mxu0 %v2300
        %v2302 = vpop.f32.mrf.mxu0
        %v2303 = vadd.f32 %v2082, %v2302
        %v2304 = vpop.f32.mrf.mxu0
        %2305 = vmatprep.mubr.f32.mxu0 0.0
        %v2306 = vand.u32 %v966, 4294901760
        %2307 = vmatmul.mubr.f32.gmra.mxu0 %v2306
        %v2308 = vpop.f32.mrf.mxu0
        %v2309 = vadd.f32 %v2090, %v2308
        %v2310 = vpop.f32.mrf.mxu0
        %2311 = vmatprep.mubr.f32.mxu0 0.0
        %v2312 = vand.u32 %v967, 4294901760
        %2313 = vmatmul.mubr.f32.gmra.mxu0 %v2312
        %v2314 = vpop.f32.mrf.mxu0
        %v2315 = vadd.f32 %v2098, %v2314
        %v2316 = vpop.f32.mrf.mxu0
        %2317 = vmatprep.mubr.f32.mxu0 0.0
        %v2318 = vand.u32 %v968, 4294901760
        %2319 = vmatmul.mubr.f32.gmra.mxu0 %v2318
        %v2320 = vpop.f32.mrf.mxu0
        %v2321 = vadd.f32 %v2106, %v2320
        %v2322 = vpop.f32.mrf.mxu0
        %2323 = vmatprep.mubr.f32.mxu0 0.0
        %v2324 = vand.u32 %v969, 4294901760
        %2325 = vmatmul.mubr.f32.gmra.mxu0 %v2324
        %v2326 = vpop.f32.mrf.mxu0
        %v2327 = vadd.f32 %v2114, %v2326
        %v2328 = vpop.f32.mrf.mxu0
        %2329 = vmatprep.mubr.f32.mxu0 0.0
        %v2330 = vand.u32 %v970, 4294901760
        %2331 = vmatmul.mubr.f32.gmra.mxu0 %v2330
        %v2332 = vpop.f32.mrf.mxu0
        %v2333 = vadd.f32 %v2122, %v2332
        %v2334 = vpop.f32.mrf.mxu0
        %2335 = vmatprep.mubr.f32.mxu0 0.0
        %v2336 = vand.u32 %v971, 4294901760
        %2337 = vmatmul.mubr.f32.gmra.mxu0 %v2336
        %v2338 = vpop.f32.mrf.mxu0
        %v2339 = vadd.f32 %v2130, %v2338
        %v2340 = vpop.f32.mrf.mxu0
        %2341 = vdwg.mxu0
        %2342 = vmatprep.subr.mxu0 0.0
        %v2343 = vand.u32 %v1216, 4294901760
        %2344 = vmatpush1.msra.mxu0 %v2343
        %2345 = vmatprep.subr.mxu0 0.0
        %v2346 = vand.u32 %v1215, 4294901760
        %2347 = vmatpush1.msra.mxu0 %v2346
        %2348 = vmatprep.subr.mxu0 0.0
        %v2349 = vand.u32 %v1214, 4294901760
        %2350 = vmatpush1.msra.mxu0 %v2349
        %2351 = vmatprep.subr.mxu0 0.0
        %v2352 = vand.u32 %v1213, 4294901760
        %2353 = vmatpush1.msra.mxu0 %v2352
        %2354 = vmatprep.subr.mxu0 0.0
        %v2355 = vand.u32 %v1212, 4294901760
        %2356 = vmatpush1.msra.mxu0 %v2355
        %2357 = vmatprep.subr.mxu0 0.0
        %v2358 = vand.u32 %v1211, 4294901760
        %2359 = vmatpush1.msra.mxu0 %v2358
        %2360 = vmatprep.subr.mxu0 0.0
        %v2361 = vand.u32 %v1210, 4294901760
        %2362 = vmatpush1.msra.mxu0 %v2361
        %2363 = vmatprep.subr.mxu0 0.0
        %v2364 = vand.u32 %v1209, 4294901760
        %2365 = vmatpush1.msra.mxu0 %v2364
        %2366 = vmatprep.subr.mxu0 0.0
        %v2367 = vand.u32 %v1208, 4294901760
        %2368 = vmatpush1.msra.mxu0 %v2367
        %2369 = vmatprep.subr.mxu0 0.0
        %v2370 = vand.u32 %v1207, 4294901760
        %2371 = vmatpush1.msra.mxu0 %v2370
        %2372 = vmatprep.subr.mxu0 0.0
        %v2373 = vand.u32 %v1206, 4294901760
        %2374 = vmatpush1.msra.mxu0 %v2373
        %2375 = vmatprep.subr.mxu0 0.0
        %v2376 = vand.u32 %v1205, 4294901760
        %2377 = vmatpush1.msra.mxu0 %v2376
        %2378 = vmatprep.subr.mxu0 0.0
        %v2379 = vand.u32 %v1204, 4294901760
        %2380 = vmatpush1.msra.mxu0 %v2379
        %2381 = vmatprep.subr.mxu0 0.0
        %v2382 = vand.u32 %v1203, 4294901760
        %2383 = vmatpush1.msra.mxu0 %v2382
        %2384 = vmatprep.subr.mxu0 0.0
        %v2385 = vand.u32 %v1202, 4294901760
        %2386 = vmatpush1.msra.mxu0 %v2385
        %2387 = vmatprep.subr.mxu0 0.0
        %v2388 = vand.u32 %v1201, 4294901760
        %2389 = vmatpush1.msra.mxu0 %v2388
        %2390 = vmatprep.subr.mxu0 0.0
        %2391 = vmatpush2.msra.mxu0 0.0
        %2392 = vmatprep.subr.mxu0 0.0
        %2393 = vmatpush2.msra.mxu0 0.0
        %2394 = vmatprep.subr.mxu0 0.0
        %2395 = vmatpush2.msra.mxu0 0.0
        %2396 = vmatprep.subr.mxu0 0.0
        %2397 = vmatpush2.msra.mxu0 0.0
        %2398 = vmatprep.subr.mxu0 0.0
        %2399 = vmatpush2.msra.mxu0 0.0
        %2400 = vmatprep.subr.mxu0 0.0
        %2401 = vmatpush2.msra.mxu0 0.0
        %2402 = vmatprep.subr.mxu0 0.0
        %2403 = vmatpush2.msra.mxu0 0.0
        %2404 = vmatprep.subr.mxu0 0.0
        %2405 = vmatpush2.msra.mxu0 0.0
        %2406 = vmatprep.subr.mxu0 0.0
        %2407 = vmatpush2.msra.mxu0 0.0
        %2408 = vmatprep.subr.mxu0 0.0
        %2409 = vmatpush2.msra.mxu0 0.0
        %2410 = vmatprep.subr.mxu0 0.0
        %2411 = vmatpush2.msra.mxu0 0.0
        %2412 = vmatprep.subr.mxu0 0.0
        %2413 = vmatpush2.msra.mxu0 0.0
        %2414 = vmatprep.subr.mxu0 0.0
        %2415 = vmatpush2.msra.mxu0 0.0
        %2416 = vmatprep.subr.mxu0 0.0
        %2417 = vmatpush2.msra.mxu0 0.0
        %2418 = vmatprep.subr.mxu0 0.0
        %2419 = vmatpush2.msra.mxu0 0.0
        %2420 = vmatprep.subr.mxu0 0.0
        %2421 = vmatpush2.msra.mxu0 0.0
        %2422 = vmatprep.mubr.f32.mxu0 0.0
        %v2423 = vand.u32 %v956, 4294901760
        %2424 = vmatmul.mubr.f32.gmra.mxu0 %v2423
        %v2425 = vpop.f32.mrf.mxu0
        %v2426 = vadd.f32 %v2249, %v2425
        %v2427 = vpop.f32.mrf.mxu0
        %2428 = vmatprep.mubr.f32.mxu0 0.0
        %v2429 = vand.u32 %v957, 4294901760
        %2430 = vmatmul.mubr.f32.gmra.mxu0 %v2429
        %v2431 = vpop.f32.mrf.mxu0
        %v2432 = vadd.f32 %v2255, %v2431
        %v2433 = vpop.f32.mrf.mxu0
        %2434 = vmatprep.mubr.f32.mxu0 0.0
        %v2435 = vand.u32 %v958, 4294901760
        %2436 = vmatmul.mubr.f32.gmra.mxu0 %v2435
        %v2437 = vpop.f32.mrf.mxu0
        %v2438 = vadd.f32 %v2261, %v2437
        %v2439 = vpop.f32.mrf.mxu0
        %2440 = vmatprep.mubr.f32.mxu0 0.0
        %v2441 = vand.u32 %v959, 4294901760
        %2442 = vmatmul.mubr.f32.gmra.mxu0 %v2441
        %v2443 = vpop.f32.mrf.mxu0
        %v2444 = vadd.f32 %v2267, %v2443
        %v2445 = vpop.f32.mrf.mxu0
        %2446 = vmatprep.mubr.f32.mxu0 0.0
        %v2447 = vand.u32 %v960, 4294901760
        %2448 = vmatmul.mubr.f32.gmra.mxu0 %v2447
        %v2449 = vpop.f32.mrf.mxu0
        %v2450 = vadd.f32 %v2273, %v2449
        %v2451 = vpop.f32.mrf.mxu0
        %2452 = vmatprep.mubr.f32.mxu0 0.0
        %v2453 = vand.u32 %v961, 4294901760
        %2454 = vmatmul.mubr.f32.gmra.mxu0 %v2453
        %v2455 = vpop.f32.mrf.mxu0
        %v2456 = vadd.f32 %v2279, %v2455
        %v2457 = vpop.f32.mrf.mxu0
        %2458 = vmatprep.mubr.f32.mxu0 0.0
        %v2459 = vand.u32 %v962, 4294901760
        %2460 = vmatmul.mubr.f32.gmra.mxu0 %v2459
        %v2461 = vpop.f32.mrf.mxu0
        %v2462 = vadd.f32 %v2285, %v2461
        %v2463 = vpop.f32.mrf.mxu0
        %2464 = vmatprep.mubr.f32.mxu0 0.0
        %v2465 = vand.u32 %v963, 4294901760
        %2466 = vmatmul.mubr.f32.gmra.mxu0 %v2465
        %v2467 = vpop.f32.mrf.mxu0
        %v2468 = vadd.f32 %v2291, %v2467
        %v2469 = vpop.f32.mrf.mxu0
        %2470 = vmatprep.mubr.f32.mxu0 0.0
        %v2471 = vand.u32 %v964, 4294901760
        %2472 = vmatmul.mubr.f32.gmra.mxu0 %v2471
        %v2473 = vpop.f32.mrf.mxu0
        %v2474 = vadd.f32 %v2297, %v2473
        %v2475 = vpop.f32.mrf.mxu0
        %2476 = vmatprep.mubr.f32.mxu0 0.0
        %v2477 = vand.u32 %v965, 4294901760
        %2478 = vmatmul.mubr.f32.gmra.mxu0 %v2477
        %v2479 = vpop.f32.mrf.mxu0
        %v2480 = vadd.f32 %v2303, %v2479
        %v2481 = vpop.f32.mrf.mxu0
        %2482 = vmatprep.mubr.f32.mxu0 0.0
        %v2483 = vand.u32 %v966, 4294901760
        %2484 = vmatmul.mubr.f32.gmra.mxu0 %v2483
        %v2485 = vpop.f32.mrf.mxu0
        %v2486 = vadd.f32 %v2309, %v2485
        %v2487 = vpop.f32.mrf.mxu0
        %2488 = vmatprep.mubr.f32.mxu0 0.0
        %v2489 = vand.u32 %v967, 4294901760
        %2490 = vmatmul.mubr.f32.gmra.mxu0 %v2489
        %v2491 = vpop.f32.mrf.mxu0
        %v2492 = vadd.f32 %v2315, %v2491
        %v2493 = vpop.f32.mrf.mxu0
        %2494 = vmatprep.mubr.f32.mxu0 0.0
        %v2495 = vand.u32 %v968, 4294901760
        %2496 = vmatmul.mubr.f32.gmra.mxu0 %v2495
        %v2497 = vpop.f32.mrf.mxu0
        %v2498 = vadd.f32 %v2321, %v2497
        %v2499 = vpop.f32.mrf.mxu0
        %2500 = vmatprep.mubr.f32.mxu0 0.0
        %v2501 = vand.u32 %v969, 4294901760
        %2502 = vmatmul.mubr.f32.gmra.mxu0 %v2501
        %v2503 = vpop.f32.mrf.mxu0
        %v2504 = vadd.f32 %v2327, %v2503
        %v2505 = vpop.f32.mrf.mxu0
        %2506 = vmatprep.mubr.f32.mxu0 0.0
        %v2507 = vand.u32 %v970, 4294901760
        %2508 = vmatmul.mubr.f32.gmra.mxu0 %v2507
        %v2509 = vpop.f32.mrf.mxu0
        %v2510 = vadd.f32 %v2333, %v2509
        %v2511 = vpop.f32.mrf.mxu0
        %2512 = vmatprep.mubr.f32.mxu0 0.0
        %v2513 = vand.u32 %v971, 4294901760
        %2514 = vmatmul.mubr.f32.gmra.mxu0 %v2513
        %v2515 = vpop.f32.mrf.mxu0
        %v2516 = vadd.f32 %v2339, %v2515
        %v2517 = vpop.f32.mrf.mxu0
        %2518 = vdwg.mxu0
        %v2519 = vadd.f32 %v1217, %v2426
        %v2520 = vadd.f32 %v1218, %v2432
        %v2521 = vadd.f32 %v1219, %v2438
        %v2522 = vadd.f32 %v1220, %v2444
        %v2523 = vadd.f32 %v1221, %v2450
        %v2524 = vadd.f32 %v1222, %v2456
        %v2525 = vadd.f32 %v1223, %v2462
        %v2526 = vadd.f32 %v1224, %v2468
        %v2527 = vadd.f32 %v1225, %v2474
        %v2528 = vadd.f32 %v1226, %v2480
        %v2529 = vadd.f32 %v1227, %v2486
        %v2530 = vadd.f32 %v1228, %v2492
        %v2531 = vadd.f32 %v1229, %v2498
        %v2532 = vadd.f32 %v1230, %v2504
        %v2533 = vadd.f32 %v1231, %v2510
        %v2534 = vadd.f32 %v1232, %v2516
        %2535 = vst [vmem:[#allocation2] sm:$0xff] %v2519
        %2536 = vst [vmem:[#allocation2 + $0x8] sm:$0xff] %v2520
        %2537 = vst [vmem:[#allocation2 + $0x10] sm:$0xff] %v2521
        %2538 = vst [vmem:[#allocation2 + $0x18] sm:$0xff] %v2522
        %2539 = vst [vmem:[#allocation2 + $0x20] sm:$0xff] %v2523
        %2540 = vst [vmem:[#allocation2 + $0x28] sm:$0xff] %v2524
        %2541 = vst [vmem:[#allocation2 + $0x30] sm:$0xff] %v2525
        %2542 = vst [vmem:[#allocation2 + $0x38] sm:$0xff] %v2526
        %2543 = vst [vmem:[#allocation2 + $0x40] sm:$0xff] %v2527
        %2544 = vst [vmem:[#allocation2 + $0x48] sm:$0xff] %v2528
        %2545 = vst [vmem:[#allocation2 + $0x50] sm:$0xff] %v2529
        %2546 = vst [vmem:[#allocation2 + $0x58] sm:$0xff] %v2530
        %2547 = vst [vmem:[#allocation2 + $0x60] sm:$0xff] %v2531
        %2548 = vst [vmem:[#allocation2 + $0x68] sm:$0xff] %v2532
        %2549 = vst [vmem:[#allocation2 + $0x70] sm:$0xff] %v2533
        %2550 = vst [vmem:[#allocation2 + $0x78] sm:$0xff] %v2534
        %p2551 = scmp.eq.s32.totalorder %s25, 1
        // Predicated region
        $region91: #{_frequency_repulsion_jit.1} parent=81 // pred_check
          %p2552 = pneg %p2551
        $region92: #{_frequency_repulsion_jit.1} parent=81 // pred_check_branch
          %2554 = sbr.rel (%p2552) target = $region94
        $region93: #{_frequency_repulsion_jit.1} parent=81 // pred_region
          %v2555 = vld [vmem:[#allocation2] sm:$0xff]
          %v2556 = vld [vmem:[#allocation2 + $0x8] sm:$0xff]
          %v2557 = vld [vmem:[#allocation2 + $0x10] sm:$0xff]
          %v2558 = vld [vmem:[#allocation2 + $0x18] sm:$0xff]
          %v2559 = vld [vmem:[#allocation2 + $0x20] sm:$0xff]
          %v2560 = vld [vmem:[#allocation2 + $0x28] sm:$0xff]
          %v2561 = vld [vmem:[#allocation2 + $0x30] sm:$0xff]
          %v2562 = vld [vmem:[#allocation2 + $0x38] sm:$0xff]
          %v2563 = vld [vmem:[#allocation2 + $0x40] sm:$0xff]
          %v2564 = vld [vmem:[#allocation2 + $0x48] sm:$0xff]
          %v2565 = vld [vmem:[#allocation2 + $0x50] sm:$0xff]
          %v2566 = vld [vmem:[#allocation2 + $0x58] sm:$0xff]
          %v2567 = vld [vmem:[#allocation2 + $0x60] sm:$0xff]
          %v2568 = vld [vmem:[#allocation2 + $0x68] sm:$0xff]
          %v2569 = vld [vmem:[#allocation2 + $0x70] sm:$0xff]
          %v2570 = vld [vmem:[#allocation2 + $0x78] sm:$0xff]
          %v2571 = vld [vmem:[%s463] sm:$0xff]
          %v2572 = vld [vmem:[%s463 + $0x8] sm:$0xff]
          %v2573 = vld [vmem:[%s463 + $0x10] sm:$0xff]
          %v2574 = vld [vmem:[%s463 + $0x18] sm:$0xff]
          %v2575 = vld [vmem:[%s463 + $0x20] sm:$0xff]
          %v2576 = vld [vmem:[%s463 + $0x28] sm:$0xff]
          %v2577 = vld [vmem:[%s463 + $0x30] sm:$0xff]
          %v2578 = vld [vmem:[%s463 + $0x38] sm:$0xff]
          %v2579 = vld [vmem:[%s463 + $0x40] sm:$0xff]
          %v2580 = vld [vmem:[%s463 + $0x48] sm:$0xff]
          %v2581 = vld [vmem:[%s463 + $0x50] sm:$0xff]
          %v2582 = vld [vmem:[%s463 + $0x58] sm:$0xff]
          %v2583 = vld [vmem:[%s463 + $0x60] sm:$0xff]
          %v2584 = vld [vmem:[%s463 + $0x68] sm:$0xff]
          %v2585 = vld [vmem:[%s463 + $0x70] sm:$0xff]
          %v2586 = vld [vmem:[%s463 + $0x78] sm:$0xff]
          %v2587 = vmul.f32 %v2571, %v2555
          %v2588 = vmul.f32 %v2572, %v2556
          %v2589 = vmul.f32 %v2573, %v2557
          %v2590 = vmul.f32 %v2574, %v2558
          %v2591 = vmul.f32 %v2575, %v2559
          %v2592 = vmul.f32 %v2576, %v2560
          %v2593 = vmul.f32 %v2577, %v2561
          %v2594 = vmul.f32 %v2578, %v2562
          %v2595 = vmul.f32 %v2579, %v2563
          %v2596 = vmul.f32 %v2580, %v2564
          %v2597 = vmul.f32 %v2581, %v2565
          %v2598 = vmul.f32 %v2582, %v2566
          %v2599 = vmul.f32 %v2583, %v2567
          %v2600 = vmul.f32 %v2584, %v2568
          %v2601 = vmul.f32 %v2585, %v2569
          %v2602 = vmul.f32 %v2586, %v2570
          %2619 = vrot.lane.b32.xlu0 %v2555, 127
          %v2620 = vpop.permute.xlu0 %2619
          %2621 = vrot.lane.b32.xlu0 %v2556, 127
          %v2622 = vpop.permute.xlu0 %2621
          %2623 = vrot.lane.b32.xlu0 %v2557, 127
          %v2624 = vpop.permute.xlu0 %2623
          %2625 = vrot.lane.b32.xlu0 %v2558, 127
          %v2626 = vpop.permute.xlu0 %2625
          %2627 = vrot.lane.b32.xlu0 %v2559, 127
          %v2628 = vpop.permute.xlu0 %2627
          %2629 = vrot.lane.b32.xlu0 %v2560, 127
          %v2630 = vpop.permute.xlu0 %2629
          %2631 = vrot.lane.b32.xlu0 %v2561, 127
          %v2632 = vpop.permute.xlu0 %2631
          %2633 = vrot.lane.b32.xlu0 %v2562, 127
          %v2634 = vpop.permute.xlu0 %2633
          %2635 = vrot.lane.b32.xlu0 %v2563, 127
          %v2636 = vpop.permute.xlu0 %2635
          %2637 = vrot.lane.b32.xlu0 %v2564, 127
          %v2638 = vpop.permute.xlu0 %2637
          %2639 = vrot.lane.b32.xlu0 %v2565, 127
          %v2640 = vpop.permute.xlu0 %2639
          %2641 = vrot.lane.b32.xlu0 %v2566, 127
          %v2642 = vpop.permute.xlu0 %2641
          %2643 = vrot.lane.b32.xlu0 %v2567, 127
          %v2644 = vpop.permute.xlu0 %2643
          %2645 = vrot.lane.b32.xlu0 %v2568, 127
          %v2646 = vpop.permute.xlu0 %2645
          %2647 = vrot.lane.b32.xlu0 %v2569, 127
          %v2648 = vpop.permute.xlu0 %2647
          %2649 = vrot.lane.b32.xlu0 %v2570, 127
          %v2650 = vpop.permute.xlu0 %2649
          %v2667 = vsub.f32 %v2587, %v2620
          %v2668 = vsub.f32 %v2588, %v2622
          %v2669 = vsub.f32 %v2589, %v2624
          %v2670 = vsub.f32 %v2590, %v2626
          %v2671 = vsub.f32 %v2591, %v2628
          %v2672 = vsub.f32 %v2592, %v2630
          %v2673 = vsub.f32 %v2593, %v2632
          %v2674 = vsub.f32 %v2594, %v2634
          %v2675 = vsub.f32 %v2595, %v2636
          %v2676 = vsub.f32 %v2596, %v2638
          %v2677 = vsub.f32 %v2597, %v2640
          %v2678 = vsub.f32 %v2598, %v2642
          %v2679 = vsub.f32 %v2599, %v2644
          %v2680 = vsub.f32 %v2600, %v2646
          %v2681 = vsub.f32 %v2601, %v2648
          %v2682 = vsub.f32 %v2602, %v2650
          %vm2683 = vcmask 7168
          %2684 = vst.msk [vmem:[%s494] sm:$0xff] %vm2683, %v2667
          %2685 = vst.msk [vmem:[%s494 + $0x8] sm:$0xff] %vm2683, %v2668
          %2686 = vst.msk [vmem:[%s494 + $0x10] sm:$0xff] %vm2683, %v2669
          %2687 = vst.msk [vmem:[%s494 + $0x18] sm:$0xff] %vm2683, %v2670
          %2688 = vst.msk [vmem:[%s494 + $0x20] sm:$0xff] %vm2683, %v2671
          %2689 = vst.msk [vmem:[%s494 + $0x28] sm:$0xff] %vm2683, %v2672
          %2690 = vst.msk [vmem:[%s494 + $0x30] sm:$0xff] %vm2683, %v2673
          %2691 = vst.msk [vmem:[%s494 + $0x38] sm:$0xff] %vm2683, %v2674
          %2692 = vst.msk [vmem:[%s494 + $0x40] sm:$0xff] %vm2683, %v2675
          %2693 = vst.msk [vmem:[%s494 + $0x48] sm:$0xff] %vm2683, %v2676
          %2694 = vst.msk [vmem:[%s494 + $0x50] sm:$0xff] %vm2683, %v2677
          %2695 = vst.msk [vmem:[%s494 + $0x58] sm:$0xff] %vm2683, %v2678
          %2696 = vst.msk [vmem:[%s494 + $0x60] sm:$0xff] %vm2683, %v2679
          %2697 = vst.msk [vmem:[%s494 + $0x68] sm:$0xff] %vm2683, %v2680
          %2698 = vst.msk [vmem:[%s494 + $0x70] sm:$0xff] %vm2683, %v2681
          %2699 = vst.msk [vmem:[%s494 + $0x78] sm:$0xff] %vm2683, %v2682
          %v2700 = vld [vmem:[%s469] sm:$0xff]
          %v2701 = vld [vmem:[%s469 + $0x8] sm:$0xff]
          %v2702 = vld [vmem:[%s469 + $0x10] sm:$0xff]
          %v2703 = vld [vmem:[%s469 + $0x18] sm:$0xff]
          %v2704 = vld [vmem:[%s469 + $0x20] sm:$0xff]
          %v2705 = vld [vmem:[%s469 + $0x28] sm:$0xff]
          %v2706 = vld [vmem:[%s469 + $0x30] sm:$0xff]
          %v2707 = vld [vmem:[%s469 + $0x38] sm:$0xff]
          %v2708 = vld [vmem:[%s469 + $0x40] sm:$0xff]
          %v2709 = vld [vmem:[%s469 + $0x48] sm:$0xff]
          %v2710 = vld [vmem:[%s469 + $0x50] sm:$0xff]
          %v2711 = vld [vmem:[%s469 + $0x58] sm:$0xff]
          %v2712 = vld [vmem:[%s469 + $0x60] sm:$0xff]
          %v2713 = vld [vmem:[%s469 + $0x68] sm:$0xff]
          %v2714 = vld [vmem:[%s469 + $0x70] sm:$0xff]
          %v2715 = vld [vmem:[%s469 + $0x78] sm:$0xff]
          %v2716 = vmul.f32 %v2700, %v2555
          %v2717 = vmul.f32 %v2701, %v2556
          %v2718 = vmul.f32 %v2702, %v2557
          %v2719 = vmul.f32 %v2703, %v2558
          %v2720 = vmul.f32 %v2704, %v2559
          %v2721 = vmul.f32 %v2705, %v2560
          %v2722 = vmul.f32 %v2706, %v2561
          %v2723 = vmul.f32 %v2707, %v2562
          %v2724 = vmul.f32 %v2708, %v2563
          %v2725 = vmul.f32 %v2709, %v2564
          %v2726 = vmul.f32 %v2710, %v2565
          %v2727 = vmul.f32 %v2711, %v2566
          %v2728 = vmul.f32 %v2712, %v2567
          %v2729 = vmul.f32 %v2713, %v2568
          %v2730 = vmul.f32 %v2714, %v2569
          %v2731 = vmul.f32 %v2715, %v2570
          %2732 = vrot.lane.b32.xlu0 %v2555, 126
          %v2733 = vpop.permute.xlu0 %2732
          %2734 = vrot.lane.b32.xlu0 %v2556, 126
          %v2735 = vpop.permute.xlu0 %2734
          %2736 = vrot.lane.b32.xlu0 %v2557, 126
          %v2737 = vpop.permute.xlu0 %2736
          %2738 = vrot.lane.b32.xlu0 %v2558, 126
          %v2739 = vpop.permute.xlu0 %2738
          %2740 = vrot.lane.b32.xlu0 %v2559, 126
          %v2741 = vpop.permute.xlu0 %2740
          %2742 = vrot.lane.b32.xlu0 %v2560, 126
          %v2743 = vpop.permute.xlu0 %2742
          %2744 = vrot.lane.b32.xlu0 %v2561, 126
          %v2745 = vpop.permute.xlu0 %2744
          %2746 = vrot.lane.b32.xlu0 %v2562, 126
          %v2747 = vpop.permute.xlu0 %2746
          %2748 = vrot.lane.b32.xlu0 %v2563, 126
          %v2749 = vpop.permute.xlu0 %2748
          %2750 = vrot.lane.b32.xlu0 %v2564, 126
          %v2751 = vpop.permute.xlu0 %2750
          %2752 = vrot.lane.b32.xlu0 %v2565, 126
          %v2753 = vpop.permute.xlu0 %2752
          %2754 = vrot.lane.b32.xlu0 %v2566, 126
          %v2755 = vpop.permute.xlu0 %2754
          %2756 = vrot.lane.b32.xlu0 %v2567, 126
          %v2757 = vpop.permute.xlu0 %2756
          %2758 = vrot.lane.b32.xlu0 %v2568, 126
          %v2759 = vpop.permute.xlu0 %2758
          %2760 = vrot.lane.b32.xlu0 %v2569, 126
          %v2761 = vpop.permute.xlu0 %2760
          %2762 = vrot.lane.b32.xlu0 %v2570, 126
          %v2763 = vpop.permute.xlu0 %2762
          %v2780 = vsub.f32 %v2716, %v2733
          %v2781 = vsub.f32 %v2717, %v2735
          %v2782 = vsub.f32 %v2718, %v2737
          %v2783 = vsub.f32 %v2719, %v2739
          %v2784 = vsub.f32 %v2720, %v2741
          %v2785 = vsub.f32 %v2721, %v2743
          %v2786 = vsub.f32 %v2722, %v2745
          %v2787 = vsub.f32 %v2723, %v2747
          %v2788 = vsub.f32 %v2724, %v2749
          %v2789 = vsub.f32 %v2725, %v2751
          %v2790 = vsub.f32 %v2726, %v2753
          %v2791 = vsub.f32 %v2727, %v2755
          %v2792 = vsub.f32 %v2728, %v2757
          %v2793 = vsub.f32 %v2729, %v2759
          %v2794 = vsub.f32 %v2730, %v2761
          %v2795 = vsub.f32 %v2731, %v2763
          %2796 = vst.msk [vmem:[%s500] sm:$0xff] %vm2683, %v2780
          %2797 = vst.msk [vmem:[%s500 + $0x8] sm:$0xff] %vm2683, %v2781
          %2798 = vst.msk [vmem:[%s500 + $0x10] sm:$0xff] %vm2683, %v2782
          %2799 = vst.msk [vmem:[%s500 + $0x18] sm:$0xff] %vm2683, %v2783
          %2800 = vst.msk [vmem:[%s500 + $0x20] sm:$0xff] %vm2683, %v2784
          %2801 = vst.msk [vmem:[%s500 + $0x28] sm:$0xff] %vm2683, %v2785
          %2802 = vst.msk [vmem:[%s500 + $0x30] sm:$0xff] %vm2683, %v2786
          %2803 = vst.msk [vmem:[%s500 + $0x38] sm:$0xff] %vm2683, %v2787
          %2804 = vst.msk [vmem:[%s500 + $0x40] sm:$0xff] %vm2683, %v2788
          %2805 = vst.msk [vmem:[%s500 + $0x48] sm:$0xff] %vm2683, %v2789
          %2806 = vst.msk [vmem:[%s500 + $0x50] sm:$0xff] %vm2683, %v2790
          %2807 = vst.msk [vmem:[%s500 + $0x58] sm:$0xff] %vm2683, %v2791
          %2808 = vst.msk [vmem:[%s500 + $0x60] sm:$0xff] %vm2683, %v2792
          %2809 = vst.msk [vmem:[%s500 + $0x68] sm:$0xff] %vm2683, %v2793
          %2810 = vst.msk [vmem:[%s500 + $0x70] sm:$0xff] %vm2683, %v2794
          %2811 = vst.msk [vmem:[%s500 + $0x78] sm:$0xff] %vm2683, %v2795
        $region94: #{_frequency_repulsion_jit.1} parent=81 // pred_fallthru
          _
        %s2812 = smul.u32 16, %s24
        %p2813 = scmp.lt.s32.totalorder %s2812, 31
        %s2814 = scalar_select %p2813, %s2812, 31
        %s2815 = smul.addr %s2814, 8
        %s2816 = scalar_lea.vmem %s7, %s2815
        %s2817 = smul.u32 16, %s24
        %p2818 = scmp.lt.s32.totalorder %s2817, 31
        %s2819 = scalar_select %p2818, %s2817, 31
        %s2820 = smul.addr %s2819, 8
        %s2821 = scalar_lea.vmem %s8, %s2820
        // Predicated region
        $region95: #{_frequency_repulsion_jit.1} parent=81 // pred_check
          %p2822 = pneg %p234
        $region96: #{_frequency_repulsion_jit.1} parent=81 // pred_check_branch
          %2824 = sbr.rel (%p2822) target = $region98
        $region97: #{_frequency_repulsion_jit.1} parent=81 // pred_region
          %s2825 = smul.u32 16, %s24
        $region98: #{_frequency_repulsion_jit.1} parent=81 // pred_fallthru
          _
        // Predicated region
        $region99: #{_frequency_repulsion_jit.1} parent=81 // pred_check
          %p2826 = pneg %p260
        $region100: #{_frequency_repulsion_jit.1} parent=81 // pred_check_branch
          %2828 = sbr.rel (%p2826) target = $region102
        $region101: #{_frequency_repulsion_jit.1} parent=81 // pred_region
          %s2829 = smul.u32 16, %s24
        $region102: #{_frequency_repulsion_jit.1} parent=81 // pred_fallthru
          _
      $region82: #{_frequency_repulsion_jit.1} parent=5 // pred_fallthru
        _
      %p2830 = scmp.le.s32.totalorder 2, %s15
      // Predicated region
      $region103: #{_frequency_repulsion_jit.1} parent=5 // pred_check
        %p2831 = pneg %p2830
      $region104: #{_frequency_repulsion_jit.1} parent=5 // pred_check_branch
        %2833 = sbr.rel (%p2831) target = $region106
      $region105: #{_frequency_repulsion_jit.1} parent=5 // pred_region
        %s2834 = ssub.s32 %s15, 2
        // Predicated region
        $region107: #{_frequency_repulsion_jit.1} parent=105 // pred_check
          %p2835 = pneg %p240
        $region108: #{_frequency_repulsion_jit.1} parent=105 // pred_check_branch
          %2837 = sbr.rel (%p2835) target = $region110
        $region109: #{_frequency_repulsion_jit.1} parent=105 // pred_region
          %s2838 = smul.u32 16, %s26
          %p2839 = scmp.lt.s32.totalorder %s2838, 31
          %s2840 = scalar_select %p2839, %s2838, 31
          %s2841 = smul.addr %s2840, 8
          %s2842 = scalar_lea.vmem %s7, %s2841
        $region110: #{_frequency_repulsion_jit.1} parent=105 // pred_fallthru
          _
        // Predicated region
        $region111: #{_frequency_repulsion_jit.1} parent=105 // pred_check
          %p2843 = pneg %p266
        $region112: #{_frequency_repulsion_jit.1} parent=105 // pred_check_branch
          %2845 = sbr.rel (%p2843) target = $region114
        $region113: #{_frequency_repulsion_jit.1} parent=105 // pred_region
          %s2846 = smul.u32 16, %s26
          %p2847 = scmp.lt.s32.totalorder %s2846, 31
          %s2848 = scalar_select %p2847, %s2846, 31
          %s2849 = smul.addr %s2848, 8
          %s2850 = scalar_lea.vmem %s8, %s2849
        $region114: #{_frequency_repulsion_jit.1} parent=105 // pred_fallthru
          _
      $region106: #{_frequency_repulsion_jit.1} parent=5 // pred_fallthru
        _
    $region6: #{_frequency_repulsion_jit.1} parent=1 // loop_footer
      %s19 = sadd.s32 1, %s15
    $region7: #{_frequency_repulsion_jit.1} parent=1 // loop_footer_branch
      %14 = sbr.rel target = $region3
    $region8: #{_frequency_repulsion_jit.1} parent=1 // loop_exit
      _

</llo_original>
